<compile_context>
chip_gen: v5e
topology: v5e:2x2
jax: 0.10.0
libtpu: 0.0.40
codegen_flags: <defaults>
</compile_context>

<pallas_src>
import jax
import jax.numpy as jnp
from jax import lax
from jax.experimental import pallas as pl
from jax.experimental.pallas import tpu as pltpu


def _sent_att_kernel(x_ref, hcat_ref,
                     wih_ref, bih_ref, whh_ref, bhh_ref,
                     sw_ref, sb_ref, cw_ref,
                     out_ref, fout_ref):
    # Static shapes (Bp = sublane-padded batch, H = sent hidden):
    #   x_ref    : (S*Bp, 2*IN)  t-major rows; cols [0:IN]=x_t, [IN:2IN]=x_{S-1-t}
    #   hcat_ref : (Bp, 2H)      [h0_fwd | h0_bwd]
    #   wih_ref  : (2*IN, 6H)    block-diag input proj, gate cols [r_f r_b z_f z_b n_f n_b]
    #   bih_ref  : (1, 6H)       whh_ref : (2H, 6H)     bhh_ref : (1, 6H)
    #   sw_ref   : (2H, 2H)      sb_ref  : (1, 2H)      cw_ref  : (1, 2H)
    #   out_ref  : (Bp, 2H)      fout_ref: (Bp, S*2H)   lane-dense f_output
    Bp, H2 = hcat_ref.shape
    H = H2 // 2
    H4 = 4 * H
    S = fout_ref.shape[1] // H2
    f32 = jnp.float32

    # ---- 1. hoisted input projection: one MXU call covers all steps, both dirs ----
    gi_all = (jnp.dot(x_ref[...], wih_ref[...],
                      preferred_element_type=f32) + bih_ref[...])        # (S*Bp, 6H)

    whh = whh_ref[...]          # (2H, 6H), stays live across the recurrence
    bhh = bhh_ref[...]          # (1, 6H)
    h_cat = hcat_ref[...].astype(f32)                                    # (Bp, 2H)

    # ---- 2. fused bidirectional GRU recurrence (fully unrolled, S static) --------
    # Per step: one (Bp,2H)@(2H,6H) matmul + one 128-lane sigmoid + one 64-lane tanh.
    # Hidden states stay in vregs (no per-step stores, no per-step concats).
    # TODO(synk): for S >~ 16 switch to lax.fori_loop(..., unroll=2-4) carrying h_cat.
    carries = []
    for t in range(S):
        gi_t = gi_all[t * Bp:(t + 1) * Bp, :]      # static, 8-sublane-aligned slice
        gh = jnp.dot(h_cat, whh, preferred_element_type=f32) + bhh       # (Bp, 6H)
        rz = jax.nn.sigmoid(gi_t[:, :H4] + gh[:, :H4])   # [r_f r_b z_f z_b], full lane grp
        r_cat = rz[:, :H2]
        z_cat = rz[:, H2:]
        # PyTorch GRU: n = tanh(gi_n + r * (h @ W_hn^T + b_hn)); b_hn stays inside r*(.)
        n_cat = jnp.tanh(gi_t[:, H4:] + r_cat * gh[:, H4:])
        h_cat = (1.0 - z_cat) * n_cat + z_cat * h_cat
        carries.append(h_cat)

    # ---- 3. reassemble f_output from register-resident carries -------------------
    # carries[t][:, :H] = h_fwd(t),  carries[t][:, H:] = h_bwd(S-1-t)
    #   -> f(t) = select(lane < H, carries[t], carries[S-1-t])   (pure VPU select)
    col = lax.broadcasted_iota(jnp.int32, (Bp, H2), 1)
    fwd_mask = col < H
    f_rows = [jnp.where(fwd_mask, carries[t], carries[S - 1 - t]) for t in range(S)]

    # single lane-dense bulk store (Bp, S*2H); no masked per-step stores
    fout_ref[...] = jnp.concatenate(f_rows, axis=-1).astype(fout_ref.dtype)

    # ---- 4. attention: vectorized, fed from registers (no fout_ref reload) -------
    f2d = jnp.concatenate(f_rows, axis=0)                                # (S*Bp, 2H)
    u = jnp.tanh(jnp.dot(f2d, sw_ref[...],
                         preferred_element_type=f32) + sb_ref[...])      # (S*Bp, 2H)
    scores = jnp.tanh(jnp.sum(u * cw_ref[...], axis=-1, keepdims=True))  # (S*Bp, 1)
    s3 = scores.reshape(S, Bp, 1)                                        # leading-dim split
    m = jnp.max(s3, axis=0, keepdims=True)
    e = jnp.exp(s3 - m)
    attn = e / jnp.sum(e, axis=0, keepdims=True)                         # softmax over time
    f3 = f2d.reshape(S, Bp, H2)
    out_ref[...] = jnp.sum(f3 * attn, axis=0).astype(out_ref.dtype)      # (Bp, 2H)


def sent_att_net(x, h0, params):
    """Pallas-backed SentAttNet forward.  x: (S,B,2*Hw), h0: (2,B,Hs)."""
    S, B, IN = x.shape
    H = params["whh_f"].shape[1]
    H2, H3, H6 = 2 * H, 3 * H, 6 * H
    f32 = jnp.float32
    Bp = ((B + 7) // 8) * 8            # pad batch to a full sublane group

    def interleave(wf, wb):
        # gate-column order [r_f r_b | z_f z_b | n_f n_b]: sigmoid block = first 4H lanes
        parts = []
        for g in range(3):
            parts.append(wf[..., g * H:(g + 1) * H])
            parts.append(wb[..., g * H:(g + 1) * H])
        return jnp.concatenate(parts, axis=-1)

    zi = jnp.zeros((IN, H3), f32)
    zh = jnp.zeros((H, H3), f32)
    # block-diagonal input projection: rows 0:IN multiply x_t (fwd), rows IN:2IN
    # multiply x_{S-1-t} (bwd); columns in the interleaved gate order above.
    wih_packed = jnp.concatenate(
        [interleave(params["wih_f"].T.astype(f32), zi),
         interleave(zi, params["wih_b"].T.astype(f32))], axis=0)          # (2*IN, 6H)
    bih_packed = interleave(params["bih_f"][None].astype(f32),
                            params["bih_b"][None].astype(f32))            # (1, 6H)
    whh_packed = jnp.concatenate(
        [interleave(params["whh_f"].T.astype(f32), zh),
         interleave(zh, params["whh_b"].T.astype(f32))], axis=0)          # (2H, 6H)
    bhh_packed = interleave(params["bhh_f"][None].astype(f32),
                            params["bhh_b"][None].astype(f32))            # (1, 6H)

    # forward-time and reversed-time inputs fused along features so one gi row block
    # per step carries both directions' gate pre-activations (wrapper glue, free in XLA).
    xf = x.astype(f32)
    x_both = jnp.concatenate([xf, xf[::-1]], axis=-1)                     # (S, B, 2*IN)
    x_both = jnp.pad(x_both, ((0, 0), (0, Bp - B), (0, 0)))               # zero-pad batch
    x_rows = x_both.reshape(S * Bp, 2 * IN)

    h_cat0 = jnp.concatenate([h0[0], h0[1]], axis=-1).astype(f32)         # (B, 2H)
    h_cat0 = jnp.pad(h_cat0, ((0, Bp - B), (0, 0)))                       # (Bp, 2H)

    sw = params["sent_weight"].astype(f32)                                # (2H, 2H)
    sb = params["sent_bias"].astype(f32).reshape(1, H2)                   # (1, 2H)
    cw = params["context_weight"].astype(f32).T                           # (1, 2H)

    args = (x_rows, h_cat0, wih_packed, bih_packed, whh_packed, bhh_packed, sw, sb, cw)
    vmem = pl.BlockSpec(memory_space=pltpu.MemorySpace.VMEM)

    flops = (2 * S * Bp * (2 * IN) * H6       # hoisted input projection
             + 2 * S * Bp * H2 * H6           # recurrence matmuls
             + 2 * S * Bp * H2 * H2           # attention projection
             + 8 * S * Bp * H2)               # gates, scores, weighted reduction
    transcendentals = S * Bp * (6 * H) + S * Bp * (H2 + 2)
    elems = (x_rows.size + h_cat0.size + wih_packed.size + bih_packed.size
             + whh_packed.size + bhh_packed.size + sw.size + sb.size + cw.size
             + Bp * H2 + Bp * S * H2)
    bytes_accessed = 4 * elems
    footprint = 4 * (elems + S * Bp * H6)     # + gi_all temporary
    vmem_limit = int(max(4 * 1024 * 1024, 4 * footprint))   # ~footprint, plenty of headroom

    # TODO(synk): when B >= 16 (multiple documents per call) add a "parallel" batch-tile
    # grid axis so both v7x TensorCores are used and x DMA overlaps the recurrence.
    # TODO(synk): at larger shapes, cast the hoisted/attention matmul operands to bf16
    # (keep preferred_element_type=f32); skipped here to preserve the 1e-4 f32 tolerance.
    out_p, fout_p = pl.pallas_call(
        _sent_att_kernel,
        out_shape=(jax.ShapeDtypeStruct((Bp, H2), jnp.float32),
                   jax.ShapeDtypeStruct((Bp, S * H2), jnp.float32)),
        in_specs=[vmem] * len(args),
        out_specs=(vmem, vmem),
        compiler_params=pltpu.CompilerParams(vmem_limit_bytes=vmem_limit),
        cost_estimate=pl.CostEstimate(flops=flops, transcendentals=transcendentals,
                                      bytes_accessed=bytes_accessed),
    )(*args)

    # fout is lane-dense (Bp, S*2H); slice off batch padding and view in final layout.
    out = out_p[:B]
    f_out = fout_p[:B].reshape(B, S, H2)
    return out, f_out


# ---------------- pure-JAX reference (for correctness check) ----------------
def _ref_forward(x, h0, p):
    H = p["whh_f"].shape[1]

    def gru_dir(wih, whh, bih, bhh, h0d, xs):
        def step(h, x_t):
            gi = x_t @ wih.T + bih
            gh = h @ whh.T + bhh
            r = jax.nn.sigmoid(gi[:, :H] + gh[:, :H])
            z = jax.nn.sigmoid(gi[:, H:2 * H] + gh[:, H:2 * H])
            n = jnp.tanh(gi[:, 2 * H:] + r * gh[:, 2 * H:])
            h_new = (1.0 - z) * n + z * h
            return h_new, h_new
        _, hs = lax.scan(step, h0d, xs)
        return hs

    hf = gru_dir(p["wih_f"], p["whh_f"], p["bih_f"], p["bhh_f"], h0[0], x)
    hb = gru_dir(p["wih_b"], p["whh_b"], p["bih_b"], p["bhh_b"], h0[1], x[::-1])[::-1]
    f = jnp.concatenate([hf, hb], axis=-1)                                  # (S,B,2H)
    u = jnp.tanh(jnp.einsum("sbh,hk->sbk", f, p["sent_weight"]) + p["sent_bias"])
    s = jnp.tanh(jnp.einsum("sbh,hk->sbk", u, p["context_weight"]))[..., 0]  # (S,B)
    attn = jax.nn.softmax(s, axis=0)
    out = jnp.einsum("sb,sbh->bh", attn, f)
    return out, jnp.transpose(f, (1, 0, 2))


def _init_params(key, word_hidden, sent_hidden):
    IN, H = 2 * word_hidden, sent_hidden
    ks = jax.random.split(key, 11)
    bound = 1.0 / jnp.sqrt(H)
    u = lambda k, s: jax.random.uniform(k, s, jnp.float32, -bound, bound)
    n = lambda k, s: 0.05 * jax.random.normal(k, s, jnp.float32)
    return {
        "wih_f": u(ks[0], (3 * H, IN)), "whh_f": u(ks[1], (3 * H, H)),
        "bih_f": u(ks[2], (3 * H,)),    "bhh_f": u(ks[3], (3 * H,)),
        "wih_b": u(ks[4], (3 * H, IN)), "whh_b": u(ks[5], (3 * H, H)),
        "bih_b": u(ks[6], (3 * H,)),    "bhh_b": u(ks[7], (3 * H,)),
        "sent_weight": n(ks[8], (2 * H, 2 * H)),
        "sent_bias": n(ks[9], (1, 2 * H)),     # TODO(synk): PyTorch leaves sent_bias uninitialized; seeded deterministically here.
        "context_weight": n(ks[10], (2 * H, 1)),
    }


if __name__ == "__main__":
    SEQ, BATCH = 8, 4
    WORD_HIDDEN = SENT_HIDDEN = 32

    key = jax.random.PRNGKey(0)
    kx, kh, kp = jax.random.split(key, 3)
    x = jax.random.normal(kx, (SEQ, BATCH, 2 * WORD_HIDDEN), jnp.float32)
    h0 = jax.random.normal(kh, (2, BATCH, SENT_HIDDEN), jnp.float32)
    params = _init_params(kp, WORD_HIDDEN, SENT_HIDDEN)

    out, f_out = sent_att_net(x, h0, params)
    jax.block_until_ready((out, f_out))

    ref_out, ref_f = _ref_forward(x, h0, params)
    assert out.shape == (BATCH, 2 * SENT_HIDDEN)
    assert f_out.shape == (BATCH, SEQ, 2 * SENT_HIDDEN)
    assert jnp.allclose(out, ref_out, rtol=1e-4, atol=1e-4)
    assert jnp.allclose(f_out, ref_f, rtol=1e-4, atol=1e-4)

    print("KERNEL_OK")
</pallas_src>

<mosaic_0001>
module attributes {stable_mosaic.version = 11 : i64} {
  func.func @_sent_att_kernel(%arg0: memref<64x128xf32, #tpu.memory_space<vmem>>, %arg1: memref<8x64xf32, #tpu.memory_space<vmem>>, %arg2: memref<128x192xf32, #tpu.memory_space<vmem>>, %arg3: memref<1x192xf32, #tpu.memory_space<vmem>>, %arg4: memref<64x192xf32, #tpu.memory_space<vmem>>, %arg5: memref<1x192xf32, #tpu.memory_space<vmem>>, %arg6: memref<64x64xf32, #tpu.memory_space<vmem>>, %arg7: memref<1x64xf32, #tpu.memory_space<vmem>>, %arg8: memref<1x64xf32, #tpu.memory_space<vmem>>, %arg9: memref<8x64xf32, #tpu.memory_space<vmem>>, %arg10: memref<8x512xf32, #tpu.memory_space<vmem>>) attributes {dimension_semantics = [], scalar_prefetch = 0 : i64, scratch_operands = 0 : i64, tpu.core_type = #tpu.core_type<tc>} {
    %c0 = arith.constant 0 : index
    %c0_0 = arith.constant 0 : index
    %0 = vector.load %arg0[%c0, %c0_0] : memref<64x128xf32, #tpu.memory_space<vmem>>, vector<64x128xf32>
    %c0_1 = arith.constant 0 : index
    %c0_2 = arith.constant 0 : index
    %1 = vector.load %arg2[%c0_1, %c0_2] : memref<128x192xf32, #tpu.memory_space<vmem>>, vector<128x192xf32>
    %cst = arith.constant dense<0.000000e+00> : vector<64x192xf32>
    %2 = tpu.matmul %0, %1, %cst {dimension_numbers = #tpu.dot_dimension_numbers<[1], [0], [0], [1], [0, 0, 1, 1], [], []>} : vector<64x128xf32>, vector<128x192xf32>, vector<64x192xf32> -> vector<64x192xf32>
    %c0_3 = arith.constant 0 : index
    %c0_4 = arith.constant 0 : index
    %3 = vector.load %arg3[%c0_3, %c0_4] : memref<1x192xf32, #tpu.memory_space<vmem>>, vector<1x192xf32>
    %4 = vector.broadcast %3 : vector<1x192xf32> to vector<64x192xf32>
    %5 = arith.addf %2, %4 : vector<64x192xf32>
    %c0_5 = arith.constant 0 : index
    %c0_6 = arith.constant 0 : index
    %6 = vector.load %arg4[%c0_5, %c0_6] : memref<64x192xf32, #tpu.memory_space<vmem>>, vector<64x192xf32>
    %c0_7 = arith.constant 0 : index
    %c0_8 = arith.constant 0 : index
    %7 = vector.load %arg5[%c0_7, %c0_8] : memref<1x192xf32, #tpu.memory_space<vmem>>, vector<1x192xf32>
    %c0_9 = arith.constant 0 : index
    %c0_10 = arith.constant 0 : index
    %8 = vector.load %arg1[%c0_9, %c0_10] : memref<8x64xf32, #tpu.memory_space<vmem>>, vector<8x64xf32>
    %9 = vector.extract_strided_slice %5 {offsets = [0, 0], sizes = [8, 192], strides = [1, 1]} : vector<64x192xf32> to vector<8x192xf32>
    %cst_11 = arith.constant dense<0.000000e+00> : vector<8x192xf32>
    %10 = tpu.matmul %8, %6, %cst_11 {dimension_numbers = #tpu.dot_dimension_numbers<[1], [0], [0], [1], [0, 0, 1, 1], [], []>} : vector<8x64xf32>, vector<64x192xf32>, vector<8x192xf32> -> vector<8x192xf32>
    %11 = vector.broadcast %7 : vector<1x192xf32> to vector<8x192xf32>
    %12 = arith.addf %10, %11 : vector<8x192xf32>
    %13 = vector.extract_strided_slice %9 {offsets = [0, 0], sizes = [8, 128], strides = [1, 1]} : vector<8x192xf32> to vector<8x128xf32>
    %14 = vector.extract_strided_slice %12 {offsets = [0, 0], sizes = [8, 128], strides = [1, 1]} : vector<8x192xf32> to vector<8x128xf32>
    %15 = arith.addf %13, %14 : vector<8x128xf32>
    %16 = arith.negf %15 : vector<8x128xf32>
    %17 = math.exp %16 : vector<8x128xf32>
    %cst_12 = arith.constant 1.000000e+00 : f32
    %18 = vector.broadcast %cst_12 : f32 to vector<8x128xf32>
    %19 = arith.addf %18, %17 : vector<8x128xf32>
    %20 = arith.divf %18, %19 : vector<8x128xf32>
    %21 = vector.extract_strided_slice %20 {offsets = [0, 0], sizes = [8, 64], strides = [1, 1]} : vector<8x128xf32> to vector<8x64xf32>
    %22 = vector.extract_strided_slice %20 {offsets = [0, 64], sizes = [8, 64], strides = [1, 1]} : vector<8x128xf32> to vector<8x64xf32>
    %23 = vector.extract_strided_slice %9 {offsets = [0, 128], sizes = [8, 64], strides = [1, 1]} : vector<8x192xf32> to vector<8x64xf32>
    %24 = vector.extract_strided_slice %12 {offsets = [0, 128], sizes = [8, 64], strides = [1, 1]} : vector<8x192xf32> to vector<8x64xf32>
    %25 = arith.mulf %21, %24 : vector<8x64xf32>
    %26 = arith.addf %23, %25 : vector<8x64xf32>
    %27 = math.tanh %26 : vector<8x64xf32>
    %cst_13 = arith.constant 1.000000e+00 : f32
    %28 = vector.broadcast %cst_13 : f32 to vector<8x64xf32>
    %29 = arith.subf %28, %22 : vector<8x64xf32>
    %30 = arith.mulf %29, %27 : vector<8x64xf32>
    %31 = arith.mulf %22, %8 : vector<8x64xf32>
    %32 = arith.addf %30, %31 : vector<8x64xf32>
    %33 = vector.extract_strided_slice %5 {offsets = [8, 0], sizes = [8, 192], strides = [1, 1]} : vector<64x192xf32> to vector<8x192xf32>
    %cst_14 = arith.constant dense<0.000000e+00> : vector<8x192xf32>
    %34 = tpu.matmul %32, %6, %cst_14 {dimension_numbers = #tpu.dot_dimension_numbers<[1], [0], [0], [1], [0, 0, 1, 1], [], []>} : vector<8x64xf32>, vector<64x192xf32>, vector<8x192xf32> -> vector<8x192xf32>
    %35 = vector.broadcast %7 : vector<1x192xf32> to vector<8x192xf32>
    %36 = arith.addf %34, %35 : vector<8x192xf32>
    %37 = vector.extract_strided_slice %33 {offsets = [0, 0], sizes = [8, 128], strides = [1, 1]} : vector<8x192xf32> to vector<8x128xf32>
    %38 = vector.extract_strided_slice %36 {offsets = [0, 0], sizes = [8, 128], strides = [1, 1]} : vector<8x192xf32> to vector<8x128xf32>
    %39 = arith.addf %37, %38 : vector<8x128xf32>
    %40 = arith.negf %39 : vector<8x128xf32>
    %41 = math.exp %40 : vector<8x128xf32>
    %cst_15 = arith.constant 1.000000e+00 : f32
    %42 = vector.broadcast %cst_15 : f32 to vector<8x128xf32>
    %43 = arith.addf %42, %41 : vector<8x128xf32>
    %44 = arith.divf %42, %43 : vector<8x128xf32>
    %45 = vector.extract_strided_slice %44 {offsets = [0, 0], sizes = [8, 64], strides = [1, 1]} : vector<8x128xf32> to vector<8x64xf32>
    %46 = vector.extract_strided_slice %44 {offsets = [0, 64], sizes = [8, 64], strides = [1, 1]} : vector<8x128xf32> to vector<8x64xf32>
    %47 = vector.extract_strided_slice %33 {offsets = [0, 128], sizes = [8, 64], strides = [1, 1]} : vector<8x192xf32> to vector<8x64xf32>
    %48 = vector.extract_strided_slice %36 {offsets = [0, 128], sizes = [8, 64], strides = [1, 1]} : vector<8x192xf32> to vector<8x64xf32>
    %49 = arith.mulf %45, %48 : vector<8x64xf32>
    %50 = arith.addf %47, %49 : vector<8x64xf32>
    %51 = math.tanh %50 : vector<8x64xf32>
    %cst_16 = arith.constant 1.000000e+00 : f32
    %52 = vector.broadcast %cst_16 : f32 to vector<8x64xf32>
    %53 = arith.subf %52, %46 : vector<8x64xf32>
    %54 = arith.mulf %53, %51 : vector<8x64xf32>
    %55 = arith.mulf %46, %32 : vector<8x64xf32>
    %56 = arith.addf %54, %55 : vector<8x64xf32>
    %57 = vector.extract_strided_slice %5 {offsets = [16, 0], sizes = [8, 192], strides = [1, 1]} : vector<64x192xf32> to vector<8x192xf32>
    %cst_17 = arith.constant dense<0.000000e+00> : vector<8x192xf32>
    %58 = tpu.matmul %56, %6, %cst_17 {dimension_numbers = #tpu.dot_dimension_numbers<[1], [0], [0], [1], [0, 0, 1, 1], [], []>} : vector<8x64xf32>, vector<64x192xf32>, vector<8x192xf32> -> vector<8x192xf32>
    %59 = vector.broadcast %7 : vector<1x192xf32> to vector<8x192xf32>
    %60 = arith.addf %58, %59 : vector<8x192xf32>
    %61 = vector.extract_strided_slice %57 {offsets = [0, 0], sizes = [8, 128], strides = [1, 1]} : vector<8x192xf32> to vector<8x128xf32>
    %62 = vector.extract_strided_slice %60 {offsets = [0, 0], sizes = [8, 128], strides = [1, 1]} : vector<8x192xf32> to vector<8x128xf32>
    %63 = arith.addf %61, %62 : vector<8x128xf32>
    %64 = arith.negf %63 : vector<8x128xf32>
    %65 = math.exp %64 : vector<8x128xf32>
    %cst_18 = arith.constant 1.000000e+00 : f32
    %66 = vector.broadcast %cst_18 : f32 to vector<8x128xf32>
    %67 = arith.addf %66, %65 : vector<8x128xf32>
    %68 = arith.divf %66, %67 : vector<8x128xf32>
    %69 = vector.extract_strided_slice %68 {offsets = [0, 0], sizes = [8, 64], strides = [1, 1]} : vector<8x128xf32> to vector<8x64xf32>
    %70 = vector.extract_strided_slice %68 {offsets = [0, 64], sizes = [8, 64], strides = [1, 1]} : vector<8x128xf32> to vector<8x64xf32>
    %71 = vector.extract_strided_slice %57 {offsets = [0, 128], sizes = [8, 64], strides = [1, 1]} : vector<8x192xf32> to vector<8x64xf32>
    %72 = vector.extract_strided_slice %60 {offsets = [0, 128], sizes = [8, 64], strides = [1, 1]} : vector<8x192xf32> to vector<8x64xf32>
    %73 = arith.mulf %69, %72 : vector<8x64xf32>
    %74 = arith.addf %71, %73 : vector<8x64xf32>
    %75 = math.tanh %74 : vector<8x64xf32>
    %cst_19 = arith.constant 1.000000e+00 : f32
    %76 = vector.broadcast %cst_19 : f32 to vector<8x64xf32>
    %77 = arith.subf %76, %70 : vector<8x64xf32>
    %78 = arith.mulf %77, %75 : vector<8x64xf32>
    %79 = arith.mulf %70, %56 : vector<8x64xf32>
    %80 = arith.addf %78, %79 : vector<8x64xf32>
    %81 = vector.extract_strided_slice %5 {offsets = [24, 0], sizes = [8, 192], strides = [1, 1]} : vector<64x192xf32> to vector<8x192xf32>
    %cst_20 = arith.constant dense<0.000000e+00> : vector<8x192xf32>
    %82 = tpu.matmul %80, %6, %cst_20 {dimension_numbers = #tpu.dot_dimension_numbers<[1], [0], [0], [1], [0, 0, 1, 1], [], []>} : vector<8x64xf32>, vector<64x192xf32>, vector<8x192xf32> -> vector<8x192xf32>
    %83 = vector.broadcast %7 : vector<1x192xf32> to vector<8x192xf32>
    %84 = arith.addf %82, %83 : vector<8x192xf32>
    %85 = vector.extract_strided_slice %81 {offsets = [0, 0], sizes = [8, 128], strides = [1, 1]} : vector<8x192xf32> to vector<8x128xf32>
    %86 = vector.extract_strided_slice %84 {offsets = [0, 0], sizes = [8, 128], strides = [1, 1]} : vector<8x192xf32> to vector<8x128xf32>
    %87 = arith.addf %85, %86 : vector<8x128xf32>
    %88 = arith.negf %87 : vector<8x128xf32>
    %89 = math.exp %88 : vector<8x128xf32>
    %cst_21 = arith.constant 1.000000e+00 : f32
    %90 = vector.broadcast %cst_21 : f32 to vector<8x128xf32>
    %91 = arith.addf %90, %89 : vector<8x128xf32>
    %92 = arith.divf %90, %91 : vector<8x128xf32>
    %93 = vector.extract_strided_slice %92 {offsets = [0, 0], sizes = [8, 64], strides = [1, 1]} : vector<8x128xf32> to vector<8x64xf32>
    %94 = vector.extract_strided_slice %92 {offsets = [0, 64], sizes = [8, 64], strides = [1, 1]} : vector<8x128xf32> to vector<8x64xf32>
    %95 = vector.extract_strided_slice %81 {offsets = [0, 128], sizes = [8, 64], strides = [1, 1]} : vector<8x192xf32> to vector<8x64xf32>
    %96 = vector.extract_strided_slice %84 {offsets = [0, 128], sizes = [8, 64], strides = [1, 1]} : vector<8x192xf32> to vector<8x64xf32>
    %97 = arith.mulf %93, %96 : vector<8x64xf32>
    %98 = arith.addf %95, %97 : vector<8x64xf32>
    %99 = math.tanh %98 : vector<8x64xf32>
    %cst_22 = arith.constant 1.000000e+00 : f32
    %100 = vector.broadcast %cst_22 : f32 to vector<8x64xf32>
    %101 = arith.subf %100, %94 : vector<8x64xf32>
    %102 = arith.mulf %101, %99 : vector<8x64xf32>
    %103 = arith.mulf %94, %80 : vector<8x64xf32>
    %104 = arith.addf %102, %103 : vector<8x64xf32>
    %105 = vector.extract_strided_slice %5 {offsets = [32, 0], sizes = [8, 192], strides = [1, 1]} : vector<64x192xf32> to vector<8x192xf32>
    %cst_23 = arith.constant dense<0.000000e+00> : vector<8x192xf32>
    %106 = tpu.matmul %104, %6, %cst_23 {dimension_numbers = #tpu.dot_dimension_numbers<[1], [0], [0], [1], [0, 0, 1, 1], [], []>} : vector<8x64xf32>, vector<64x192xf32>, vector<8x192xf32> -> vector<8x192xf32>
    %107 = vector.broadcast %7 : vector<1x192xf32> to vector<8x192xf32>
    %108 = arith.addf %106, %107 : vector<8x192xf32>
    %109 = vector.extract_strided_slice %105 {offsets = [0, 0], sizes = [8, 128], strides = [1, 1]} : vector<8x192xf32> to vector<8x128xf32>
    %110 = vector.extract_strided_slice %108 {offsets = [0, 0], sizes = [8, 128], strides = [1, 1]} : vector<8x192xf32> to vector<8x128xf32>
    %111 = arith.addf %109, %110 : vector<8x128xf32>
    %112 = arith.negf %111 : vector<8x128xf32>
    %113 = math.exp %112 : vector<8x128xf32>
    %cst_24 = arith.constant 1.000000e+00 : f32
    %114 = vector.broadcast %cst_24 : f32 to vector<8x128xf32>
    %115 = arith.addf %114, %113 : vector<8x128xf32>
    %116 = arith.divf %114, %115 : vector<8x128xf32>
    %117 = vector.extract_strided_slice %116 {offsets = [0, 0], sizes = [8, 64], strides = [1, 1]} : vector<8x128xf32> to vector<8x64xf32>
    %118 = vector.extract_strided_slice %116 {offsets = [0, 64], sizes = [8, 64], strides = [1, 1]} : vector<8x128xf32> to vector<8x64xf32>
    %119 = vector.extract_strided_slice %105 {offsets = [0, 128], sizes = [8, 64], strides = [1, 1]} : vector<8x192xf32> to vector<8x64xf32>
    %120 = vector.extract_strided_slice %108 {offsets = [0, 128], sizes = [8, 64], strides = [1, 1]} : vector<8x192xf32> to vector<8x64xf32>
    %121 = arith.mulf %117, %120 : vector<8x64xf32>
    %122 = arith.addf %119, %121 : vector<8x64xf32>
    %123 = math.tanh %122 : vector<8x64xf32>
    %cst_25 = arith.constant 1.000000e+00 : f32
    %124 = vector.broadcast %cst_25 : f32 to vector<8x64xf32>
    %125 = arith.subf %124, %118 : vector<8x64xf32>
    %126 = arith.mulf %125, %123 : vector<8x64xf32>
    %127 = arith.mulf %118, %104 : vector<8x64xf32>
    %128 = arith.addf %126, %127 : vector<8x64xf32>
    %129 = vector.extract_strided_slice %5 {offsets = [40, 0], sizes = [8, 192], strides = [1, 1]} : vector<64x192xf32> to vector<8x192xf32>
    %cst_26 = arith.constant dense<0.000000e+00> : vector<8x192xf32>
    %130 = tpu.matmul %128, %6, %cst_26 {dimension_numbers = #tpu.dot_dimension_numbers<[1], [0], [0], [1], [0, 0, 1, 1], [], []>} : vector<8x64xf32>, vector<64x192xf32>, vector<8x192xf32> -> vector<8x192xf32>
    %131 = vector.broadcast %7 : vector<1x192xf32> to vector<8x192xf32>
    %132 = arith.addf %130, %131 : vector<8x192xf32>
    %133 = vector.extract_strided_slice %129 {offsets = [0, 0], sizes = [8, 128], strides = [1, 1]} : vector<8x192xf32> to vector<8x128xf32>
    %134 = vector.extract_strided_slice %132 {offsets = [0, 0], sizes = [8, 128], strides = [1, 1]} : vector<8x192xf32> to vector<8x128xf32>
    %135 = arith.addf %133, %134 : vector<8x128xf32>
    %136 = arith.negf %135 : vector<8x128xf32>
    %137 = math.exp %136 : vector<8x128xf32>
    %cst_27 = arith.constant 1.000000e+00 : f32
    %138 = vector.broadcast %cst_27 : f32 to vector<8x128xf32>
    %139 = arith.addf %138, %137 : vector<8x128xf32>
    %140 = arith.divf %138, %139 : vector<8x128xf32>
    %141 = vector.extract_strided_slice %140 {offsets = [0, 0], sizes = [8, 64], strides = [1, 1]} : vector<8x128xf32> to vector<8x64xf32>
    %142 = vector.extract_strided_slice %140 {offsets = [0, 64], sizes = [8, 64], strides = [1, 1]} : vector<8x128xf32> to vector<8x64xf32>
    %143 = vector.extract_strided_slice %129 {offsets = [0, 128], sizes = [8, 64], strides = [1, 1]} : vector<8x192xf32> to vector<8x64xf32>
    %144 = vector.extract_strided_slice %132 {offsets = [0, 128], sizes = [8, 64], strides = [1, 1]} : vector<8x192xf32> to vector<8x64xf32>
    %145 = arith.mulf %141, %144 : vector<8x64xf32>
    %146 = arith.addf %143, %145 : vector<8x64xf32>
    %147 = math.tanh %146 : vector<8x64xf32>
    %cst_28 = arith.constant 1.000000e+00 : f32
    %148 = vector.broadcast %cst_28 : f32 to vector<8x64xf32>
    %149 = arith.subf %148, %142 : vector<8x64xf32>
    %150 = arith.mulf %149, %147 : vector<8x64xf32>
    %151 = arith.mulf %142, %128 : vector<8x64xf32>
    %152 = arith.addf %150, %151 : vector<8x64xf32>
    %153 = vector.extract_strided_slice %5 {offsets = [48, 0], sizes = [8, 192], strides = [1, 1]} : vector<64x192xf32> to vector<8x192xf32>
    %cst_29 = arith.constant dense<0.000000e+00> : vector<8x192xf32>
    %154 = tpu.matmul %152, %6, %cst_29 {dimension_numbers = #tpu.dot_dimension_numbers<[1], [0], [0], [1], [0, 0, 1, 1], [], []>} : vector<8x64xf32>, vector<64x192xf32>, vector<8x192xf32> -> vector<8x192xf32>
    %155 = vector.broadcast %7 : vector<1x192xf32> to vector<8x192xf32>
    %156 = arith.addf %154, %155 : vector<8x192xf32>
    %157 = vector.extract_strided_slice %153 {offsets = [0, 0], sizes = [8, 128], strides = [1, 1]} : vector<8x192xf32> to vector<8x128xf32>
    %158 = vector.extract_strided_slice %156 {offsets = [0, 0], sizes = [8, 128], strides = [1, 1]} : vector<8x192xf32> to vector<8x128xf32>
    %159 = arith.addf %157, %158 : vector<8x128xf32>
    %160 = arith.negf %159 : vector<8x128xf32>
    %161 = math.exp %160 : vector<8x128xf32>
    %cst_30 = arith.constant 1.000000e+00 : f32
    %162 = vector.broadcast %cst_30 : f32 to vector<8x128xf32>
    %163 = arith.addf %162, %161 : vector<8x128xf32>
    %164 = arith.divf %162, %163 : vector<8x128xf32>
    %165 = vector.extract_strided_slice %164 {offsets = [0, 0], sizes = [8, 64], strides = [1, 1]} : vector<8x128xf32> to vector<8x64xf32>
    %166 = vector.extract_strided_slice %164 {offsets = [0, 64], sizes = [8, 64], strides = [1, 1]} : vector<8x128xf32> to vector<8x64xf32>
    %167 = vector.extract_strided_slice %153 {offsets = [0, 128], sizes = [8, 64], strides = [1, 1]} : vector<8x192xf32> to vector<8x64xf32>
    %168 = vector.extract_strided_slice %156 {offsets = [0, 128], sizes = [8, 64], strides = [1, 1]} : vector<8x192xf32> to vector<8x64xf32>
    %169 = arith.mulf %165, %168 : vector<8x64xf32>
    %170 = arith.addf %167, %169 : vector<8x64xf32>
    %171 = math.tanh %170 : vector<8x64xf32>
    %cst_31 = arith.constant 1.000000e+00 : f32
    %172 = vector.broadcast %cst_31 : f32 to vector<8x64xf32>
    %173 = arith.subf %172, %166 : vector<8x64xf32>
    %174 = arith.mulf %173, %171 : vector<8x64xf32>
    %175 = arith.mulf %166, %152 : vector<8x64xf32>
    %176 = arith.addf %174, %175 : vector<8x64xf32>
    %177 = vector.extract_strided_slice %5 {offsets = [56, 0], sizes = [8, 192], strides = [1, 1]} : vector<64x192xf32> to vector<8x192xf32>
    %cst_32 = arith.constant dense<0.000000e+00> : vector<8x192xf32>
    %178 = tpu.matmul %176, %6, %cst_32 {dimension_numbers = #tpu.dot_dimension_numbers<[1], [0], [0], [1], [0, 0, 1, 1], [], []>} : vector<8x64xf32>, vector<64x192xf32>, vector<8x192xf32> -> vector<8x192xf32>
    %179 = vector.broadcast %7 : vector<1x192xf32> to vector<8x192xf32>
    %180 = arith.addf %178, %179 : vector<8x192xf32>
    %181 = vector.extract_strided_slice %177 {offsets = [0, 0], sizes = [8, 128], strides = [1, 1]} : vector<8x192xf32> to vector<8x128xf32>
    %182 = vector.extract_strided_slice %180 {offsets = [0, 0], sizes = [8, 128], strides = [1, 1]} : vector<8x192xf32> to vector<8x128xf32>
    %183 = arith.addf %181, %182 : vector<8x128xf32>
    %184 = arith.negf %183 : vector<8x128xf32>
    %185 = math.exp %184 : vector<8x128xf32>
    %cst_33 = arith.constant 1.000000e+00 : f32
    %186 = vector.broadcast %cst_33 : f32 to vector<8x128xf32>
    %187 = arith.addf %186, %185 : vector<8x128xf32>
    %188 = arith.divf %186, %187 : vector<8x128xf32>
    %189 = vector.extract_strided_slice %188 {offsets = [0, 0], sizes = [8, 64], strides = [1, 1]} : vector<8x128xf32> to vector<8x64xf32>
    %190 = vector.extract_strided_slice %188 {offsets = [0, 64], sizes = [8, 64], strides = [1, 1]} : vector<8x128xf32> to vector<8x64xf32>
    %191 = vector.extract_strided_slice %177 {offsets = [0, 128], sizes = [8, 64], strides = [1, 1]} : vector<8x192xf32> to vector<8x64xf32>
    %192 = vector.extract_strided_slice %180 {offsets = [0, 128], sizes = [8, 64], strides = [1, 1]} : vector<8x192xf32> to vector<8x64xf32>
    %193 = arith.mulf %189, %192 : vector<8x64xf32>
    %194 = arith.addf %191, %193 : vector<8x64xf32>
    %195 = math.tanh %194 : vector<8x64xf32>
    %cst_34 = arith.constant 1.000000e+00 : f32
    %196 = vector.broadcast %cst_34 : f32 to vector<8x64xf32>
    %197 = arith.subf %196, %190 : vector<8x64xf32>
    %198 = arith.mulf %197, %195 : vector<8x64xf32>
    %199 = arith.mulf %190, %176 : vector<8x64xf32>
    %200 = arith.addf %198, %199 : vector<8x64xf32>
    %201 = tpu.iota {dimensions = array<i32: 1>} : vector<8x64xi32>
    %c32_i32 = arith.constant 32 : i32
    %202 = vector.broadcast %c32_i32 : i32 to vector<8x64xi32>
    %203 = arith.cmpi slt, %201, %202 : vector<8x64xi32>
    %204 = arith.select %203, %32, %200 : vector<8x64xi1>, vector<8x64xf32>
    %205 = arith.select %203, %56, %176 : vector<8x64xi1>, vector<8x64xf32>
    %206 = arith.select %203, %80, %152 : vector<8x64xi1>, vector<8x64xf32>
    %207 = arith.select %203, %104, %128 : vector<8x64xi1>, vector<8x64xf32>
    %208 = arith.select %203, %128, %104 : vector<8x64xi1>, vector<8x64xf32>
    %209 = arith.select %203, %152, %80 : vector<8x64xi1>, vector<8x64xf32>
    %210 = arith.select %203, %176, %56 : vector<8x64xi1>, vector<8x64xf32>
    %211 = arith.select %203, %200, %32 : vector<8x64xi1>, vector<8x64xf32>
    %212 = tpu.concatenate %204, %205, %206, %207, %208, %209, %210, %211 in 1 : vector<8x64xf32>, vector<8x64xf32>, vector<8x64xf32>, vector<8x64xf32>, vector<8x64xf32>, vector<8x64xf32>, vector<8x64xf32>, vector<8x64xf32> -> vector<8x512xf32>
    %c0_35 = arith.constant 0 : index
    %c0_36 = arith.constant 0 : index
    %213 = vector.load %arg10[%c0_35, %c0_36] : memref<8x512xf32, #tpu.memory_space<vmem>>, vector<8x512xf32>
    tpu.vector_store %arg10[%c0_35, %c0_36], %212 {strides = array<i32>} : memref<8x512xf32, #tpu.memory_space<vmem>>, vector<8x512xf32>,
    %214 = tpu.concatenate %204, %205, %206, %207, %208, %209, %210, %211 in 0 : vector<8x64xf32>, vector<8x64xf32>, vector<8x64xf32>, vector<8x64xf32>, vector<8x64xf32>, vector<8x64xf32>, vector<8x64xf32>, vector<8x64xf32> -> vector<64x64xf32>
    %c0_37 = arith.constant 0 : index
    %c0_38 = arith.constant 0 : index
    %215 = vector.load %arg6[%c0_37, %c0_38] : memref<64x64xf32, #tpu.memory_space<vmem>>, vector<64x64xf32>
    %cst_39 = arith.constant dense<0.000000e+00> : vector<64x64xf32>
    %216 = tpu.matmul %214, %215, %cst_39 {dimension_numbers = #tpu.dot_dimension_numbers<[1], [0], [0], [1], [0, 0, 1, 1], [], []>} : vector<64x64xf32>, vector<64x64xf32>, vector<64x64xf32> -> vector<64x64xf32>
    %c0_40 = arith.constant 0 : index
    %c0_41 = arith.constant 0 : index
    %217 = vector.load %arg7[%c0_40, %c0_41] : memref<1x64xf32, #tpu.memory_space<vmem>>, vector<1x64xf32>
    %218 = vector.broadcast %217 : vector<1x64xf32> to vector<64x64xf32>
    %219 = arith.addf %216, %218 : vector<64x64xf32>
    %220 = math.tanh %219 : vector<64x64xf32>
    %c0_42 = arith.constant 0 : index
    %c0_43 = arith.constant 0 : index
    %221 = vector.load %arg8[%c0_42, %c0_43] : memref<1x64xf32, #tpu.memory_space<vmem>>, vector<1x64xf32>
    %222 = vector.broadcast %221 : vector<1x64xf32> to vector<64x64xf32>
    %223 = arith.mulf %220, %222 : vector<64x64xf32>
    %cst_44 = arith.constant dense<0.000000e+00> : vector<64xf32>
    %224 = vector.multi_reduction <add>, %223, %cst_44 [1] : vector<64x64xf32> to vector<64xf32>
    %225 = vector.shape_cast %224 : vector<64xf32> to vector<64x1xf32>
    %226 = math.tanh %225 : vector<64x1xf32>
    %227 = vector.shape_cast %226 : vector<64x1xf32> to vector<8x8x1xf32>
    %cst_45 = arith.constant dense<0xFF800000> : vector<8x1xf32>
    %228 = vector.multi_reduction <maximumf>, %227, %cst_45 [0] : vector<8x8x1xf32> to vector<8x1xf32>
    %229 = vector.shape_cast %228 : vector<8x1xf32> to vector<1x8x1xf32>
    %230 = vector.broadcast %229 : vector<1x8x1xf32> to vector<8x8x1xf32>
    %231 = arith.subf %227, %230 : vector<8x8x1xf32>
    %232 = math.exp %231 : vector<8x8x1xf32>
    %cst_46 = arith.constant dense<0.000000e+00> : vector<8x1xf32>
    %233 = vector.multi_reduction <add>, %232, %cst_46 [0] : vector<8x8x1xf32> to vector<8x1xf32>
    %234 = vector.shape_cast %233 : vector<8x1xf32> to vector<1x8x1xf32>
    %235 = vector.broadcast %234 : vector<1x8x1xf32> to vector<8x8x1xf32>
    %236 = arith.divf %232, %235 : vector<8x8x1xf32>
    %237 = vector.shape_cast %214 : vector<64x64xf32> to vector<8x8x64xf32>
    %238 = vector.broadcast %236 : vector<8x8x1xf32> to vector<8x8x64xf32>
    %239 = arith.mulf %237, %238 : vector<8x8x64xf32>
    %cst_47 = arith.constant dense<0.000000e+00> : vector<8x64xf32>
    %240 = vector.multi_reduction <add>, %239, %cst_47 [0] : vector<8x8x64xf32> to vector<8x64xf32>
    %c0_48 = arith.constant 0 : index
    %c0_49 = arith.constant 0 : index
    %241 = vector.load %arg9[%c0_48, %c0_49] : memref<8x64xf32, #tpu.memory_space<vmem>>, vector<8x64xf32>
    tpu.vector_store %arg9[%c0_48, %c0_49], %240 {strides = array<i32>} : memref<8x64xf32, #tpu.memory_space<vmem>>, vector<8x64xf32>,
    return
  }
}

</mosaic_0001>

<llo_original>
// kernel: tpu_custom_call.1
$region0: #{tpu_custom_call.1}
  #allocation0 [shape = 'u32[]', space=smem, size = 0x4, offset = 0x4, fixed_abs, tag = 'smem constant byte address 0x4 - core index']
  #allocation1 [shape = 'u32[72,128]{1,0:T(1,128)}', space=vmem, size = 0x9000, scoped, tag = 'internal scratch']
  %s0 = inlined_call_operand.vmem [shape: f32[64,128], index: 0, kind: input, shape index: {}]
  %s1 = inlined_call_operand.vmem [shape: f32[8,64], index: 1, kind: input, shape index: {}]
  %s2 = inlined_call_operand.vmem [shape: f32[128,192], index: 2, kind: input, shape index: {}]
  %s3 = inlined_call_operand.vmem [shape: f32[1,192], index: 3, kind: input, shape index: {}]
  %s4 = inlined_call_operand.vmem [shape: f32[64,192], index: 4, kind: input, shape index: {}]
  %s5 = inlined_call_operand.vmem [shape: f32[1,192], index: 5, kind: input, shape index: {}]
  %s6 = inlined_call_operand.vmem [shape: f32[64,64], index: 6, kind: input, shape index: {}]
  %s7 = inlined_call_operand.vmem [shape: f32[1,64], index: 7, kind: input, shape index: {}]
  %s8 = inlined_call_operand.vmem [shape: f32[1,64], index: 8, kind: input, shape index: {}]
  %s9 = inlined_call_operand.hbm [shape: f32[8,64], index: 9, kind: output, shape index: {0}]
  %s10 = inlined_call_operand.hbm [shape: f32[8,512], index: 10, kind: output, shape index: {1}]
  %11 = xla_tuple %s9, %s10
  %s12 = sld [smem:[#allocation0]]
  $region54: #{tpu_custom_call.1} parent=0
    _
  %s14 = ssub.s32 1, %s12
  %s15 = scalar_select 0, %s14, %s12
  $region1: #{tpu_custom_call.1} parent=0
    #allocation2 [shape = 'u8[4096]{0}', space=vmem, size = 0x1000, scoped, tag = 'output window, operand 0, single buffered']
    #allocation3 [shape = 's32[1]{0}', space=sflag, size = 0x4, scoped, tag = 'scoped memory for tpu_custom_call.1']
    #allocation4 [shape = 'u8[16384]{0}', space=vmem, size = 0x4000, scoped, tag = 'output window, operand 1, single buffered']
    #allocation5 [shape = 's32[1]{0}', space=sflag, size = 0x4, scoped, tag = 'scoped memory for tpu_custom_call.1']
    %16 = vsyncpa [#allocation3], 0
    %17 = vsyncpa [#allocation5], 0
    // Predicated region
    $region2: #{tpu_custom_call.1} parent=1 // pred_check
      _
    $region3: #{tpu_custom_call.1} parent=1 // pred_check_branch
      %19 = sbr.rel (0) target = $region5
    $region4: #{tpu_custom_call.1} parent=1 // pred_region
      _
    $region5: #{tpu_custom_call.1} parent=1 // pred_fallthru
      _
    // Predicated region
    $region6: #{tpu_custom_call.1} parent=1 // pred_check
      _
    $region7: #{tpu_custom_call.1} parent=1 // pred_check_branch
      %21 = sbr.rel (0) target = $region9
    $region8: #{tpu_custom_call.1} parent=1 // pred_region
      _
    $region9: #{tpu_custom_call.1} parent=1 // pred_fallthru
      _
    // Predicated region
    $region10: #{tpu_custom_call.1} parent=1 // pred_check
      _
    $region11: #{tpu_custom_call.1} parent=1 // pred_check_branch
      %23 = sbr.rel (0) target = $region13
    $region12: #{tpu_custom_call.1} parent=1 // pred_region
      _
    $region13: #{tpu_custom_call.1} parent=1 // pred_fallthru
      _
    // Predicated region
    $region14: #{tpu_custom_call.1} parent=1 // pred_check
      _
    $region15: #{tpu_custom_call.1} parent=1 // pred_check_branch
      %25 = sbr.rel (0) target = $region17
    $region16: #{tpu_custom_call.1} parent=1 // pred_region
      _
    $region17: #{tpu_custom_call.1} parent=1 // pred_fallthru
      _
    // Predicated region
    $region18: #{tpu_custom_call.1} parent=1 // pred_check
      _
    $region19: #{tpu_custom_call.1} parent=1 // pred_check_branch
      %27 = sbr.rel (0) target = $region21
    $region20: #{tpu_custom_call.1} parent=1 // pred_region
      _
    $region21: #{tpu_custom_call.1} parent=1 // pred_fallthru
      _
    // Predicated region
    $region22: #{tpu_custom_call.1} parent=1 // pred_check
      _
    $region23: #{tpu_custom_call.1} parent=1 // pred_check_branch
      %29 = sbr.rel (0) target = $region25
    $region24: #{tpu_custom_call.1} parent=1 // pred_region
      _
    $region25: #{tpu_custom_call.1} parent=1 // pred_fallthru
      _
    // Predicated region
    $region26: #{tpu_custom_call.1} parent=1 // pred_check
      _
    $region27: #{tpu_custom_call.1} parent=1 // pred_check_branch
      %31 = sbr.rel (0) target = $region29
    $region28: #{tpu_custom_call.1} parent=1 // pred_region
      _
    $region29: #{tpu_custom_call.1} parent=1 // pred_fallthru
      _
    // Predicated region
    $region30: #{tpu_custom_call.1} parent=1 // pred_check
      _
    $region31: #{tpu_custom_call.1} parent=1 // pred_check_branch
      %33 = sbr.rel (0) target = $region33
    $region32: #{tpu_custom_call.1} parent=1 // pred_region
      _
    $region33: #{tpu_custom_call.1} parent=1 // pred_fallthru
      _
    // Predicated region
    $region34: #{tpu_custom_call.1} parent=1 // pred_check
      _
    $region35: #{tpu_custom_call.1} parent=1 // pred_check_branch
      %35 = sbr.rel (0) target = $region37
    $region36: #{tpu_custom_call.1} parent=1 // pred_region
      _
    $region37: #{tpu_custom_call.1} parent=1 // pred_fallthru
      _
    %v36 = vld [vmem:[%s0] sm:$0xff]
    %v37 = vld [vmem:[%s0 + $0x8] sm:$0xff]
    %v38 = vld [vmem:[%s0 + $0x10] sm:$0xff]
    %v39 = vld [vmem:[%s0 + $0x18] sm:$0xff]
    %v40 = vld [vmem:[%s0 + $0x20] sm:$0xff]
    %v41 = vld [vmem:[%s0 + $0x28] sm:$0xff]
    %v42 = vld [vmem:[%s0 + $0x30] sm:$0xff]
    %v43 = vld [vmem:[%s0 + $0x38] sm:$0xff]
    %v44 = vld [vmem:[%s2] sm:$0xff]
    %v45 = vld [vmem:[%s2 + $0x8] sm:$0xff]
    %v46 = vld [vmem:[%s2 + $0x10] sm:$0xff]
    %v47 = vld [vmem:[%s2 + $0x18] sm:$0xff]
    %v48 = vld [vmem:[%s2 + $0x20] sm:$0xff]
    %v49 = vld [vmem:[%s2 + $0x28] sm:$0xff]
    %v50 = vld [vmem:[%s2 + $0x30] sm:$0xff]
    %v51 = vld [vmem:[%s2 + $0x38] sm:$0xff]
    %v52 = vld [vmem:[%s2 + $0x40] sm:$0xff]
    %v53 = vld [vmem:[%s2 + $0x48] sm:$0xff]
    %v54 = vld [vmem:[%s2 + $0x50] sm:$0xff]
    %v55 = vld [vmem:[%s2 + $0x58] sm:$0xff]
    %v56 = vld [vmem:[%s2 + $0x60] sm:$0xff]
    %v57 = vld [vmem:[%s2 + $0x68] sm:$0xff]
    %v58 = vld [vmem:[%s2 + $0x70] sm:$0xff]
    %v59 = vld [vmem:[%s2 + $0x78] sm:$0xff]
    %v60 = vld [vmem:[%s2 + $0x80] sm:$0xff]
    %v61 = vld [vmem:[%s2 + $0x88] sm:$0xff]
    %v62 = vld [vmem:[%s2 + $0x90] sm:$0xff]
    %v63 = vld [vmem:[%s2 + $0x98] sm:$0xff]
    %v64 = vld [vmem:[%s2 + $0xa0] sm:$0xff]
    %v65 = vld [vmem:[%s2 + $0xa8] sm:$0xff]
    %v66 = vld [vmem:[%s2 + $0xb0] sm:$0xff]
    %v67 = vld [vmem:[%s2 + $0xb8] sm:$0xff]
    %v68 = vld [vmem:[%s2 + $0xc0] sm:$0xff]
    %v69 = vld [vmem:[%s2 + $0xc8] sm:$0xff]
    %v70 = vld [vmem:[%s2 + $0xd0] sm:$0xff]
    %v71 = vld [vmem:[%s2 + $0xd8] sm:$0xff]
    %v72 = vld [vmem:[%s2 + $0xe0] sm:$0xff]
    %v73 = vld [vmem:[%s2 + $0xe8] sm:$0xff]
    %v74 = vld [vmem:[%s2 + $0xf0] sm:$0xff]
    %v75 = vld [vmem:[%s2 + $0xf8] sm:$0xff]
    %v76 = vld [vmem:[%s3] sm:$0x3]
    %v78 = vperm.slane %v76, 0
    %v79 = vperm.slane %v76, 1
    %82 = vmatpush.msra.mxu0 %v74
    %83 = vmatpush.msra.mxu0 %v72
    %84 = vmatpush.msra.mxu0 %v70
    %85 = vmatpush.msra.mxu0 %v68
    %86 = vmatpush.msra.mxu0 %v66
    %87 = vmatpush.msra.mxu0 %v64
    %88 = vmatpush.msra.mxu0 %v62
    %89 = vmatpush.msra.mxu0 %v60
    %90 = vmatpush.msra.mxu0 %v58
    %91 = vmatpush.msra.mxu0 %v56
    %92 = vmatpush.msra.mxu0 %v54
    %93 = vmatpush.msra.mxu0 %v52
    %94 = vmatpush.msra.mxu0 %v50
    %95 = vmatpush.msra.mxu0 %v48
    %96 = vmatpush.msra.mxu0 %v46
    %97 = vmatpush.msra.mxu0 %v44
    %98 = vmatmul.f32.gmra.mxu0 %v36
    %v99 = vpop.f32.mrf.mxu0
    %v100 = vadd.f32 %v78, %v99
    %101 = vmatmul.f32.gmra.mxu0 %v37
    %v102 = vpop.f32.mrf.mxu0
    %v103 = vadd.f32 %v78, %v102
    %104 = vmatmul.f32.gmra.mxu0 %v38
    %v105 = vpop.f32.mrf.mxu0
    %v106 = vadd.f32 %v78, %v105
    %107 = vmatmul.f32.gmra.mxu0 %v39
    %v108 = vpop.f32.mrf.mxu0
    %v109 = vadd.f32 %v78, %v108
    %110 = vmatmul.f32.gmra.mxu0 %v40
    %v111 = vpop.f32.mrf.mxu0
    %v112 = vadd.f32 %v78, %v111
    %113 = vmatmul.f32.gmra.mxu0 %v41
    %v114 = vpop.f32.mrf.mxu0
    %v115 = vadd.f32 %v78, %v114
    %116 = vmatmul.f32.gmra.mxu0 %v42
    %v117 = vpop.f32.mrf.mxu0
    %v118 = vadd.f32 %v78, %v117
    %119 = vmatmul.f32.gmra.mxu0 %v43
    %v120 = vpop.f32.mrf.mxu0
    %v121 = vadd.f32 %v78, %v120
    %122 = vdwg.mxu0
    %123 = vmatpush.msra.mxu0 %v75
    %124 = vmatpush.msra.mxu0 %v73
    %125 = vmatpush.msra.mxu0 %v71
    %126 = vmatpush.msra.mxu0 %v69
    %127 = vmatpush.msra.mxu0 %v67
    %128 = vmatpush.msra.mxu0 %v65
    %129 = vmatpush.msra.mxu0 %v63
    %130 = vmatpush.msra.mxu0 %v61
    %131 = vmatpush.msra.mxu0 %v59
    %132 = vmatpush.msra.mxu0 %v57
    %133 = vmatpush.msra.mxu0 %v55
    %134 = vmatpush.msra.mxu0 %v53
    %135 = vmatpush.msra.mxu0 %v51
    %136 = vmatpush.msra.mxu0 %v49
    %137 = vmatpush.msra.mxu0 %v47
    %138 = vmatpush.msra.mxu0 %v45
    %139 = vmatmul.f32.gmra.mxu0 %v36
    %v140 = vpop.f32.mrf.mxu0
    %v141 = vadd.f32 %v79, %v140
    %142 = vmatmul.f32.gmra.mxu0 %v37
    %v143 = vpop.f32.mrf.mxu0
    %v144 = vadd.f32 %v79, %v143
    %145 = vmatmul.f32.gmra.mxu0 %v38
    %v146 = vpop.f32.mrf.mxu0
    %v147 = vadd.f32 %v79, %v146
    %148 = vmatmul.f32.gmra.mxu0 %v39
    %v149 = vpop.f32.mrf.mxu0
    %v150 = vadd.f32 %v79, %v149
    %151 = vmatmul.f32.gmra.mxu0 %v40
    %v152 = vpop.f32.mrf.mxu0
    %v153 = vadd.f32 %v79, %v152
    %154 = vmatmul.f32.gmra.mxu0 %v41
    %v155 = vpop.f32.mrf.mxu0
    %v156 = vadd.f32 %v79, %v155
    %157 = vmatmul.f32.gmra.mxu0 %v42
    %v158 = vpop.f32.mrf.mxu0
    %v159 = vadd.f32 %v79, %v158
    %160 = vmatmul.f32.gmra.mxu0 %v43
    %v161 = vpop.f32.mrf.mxu0
    %v162 = vadd.f32 %v79, %v161
    %163 = vdwg.mxu0
    %v164 = vld [vmem:[%s4] sm:$0xff]
    %v165 = vld [vmem:[%s4 + $0x8] sm:$0xff]
    %v166 = vld [vmem:[%s4 + $0x10] sm:$0xff]
    %v167 = vld [vmem:[%s4 + $0x18] sm:$0xff]
    %v168 = vld [vmem:[%s4 + $0x20] sm:$0xff]
    %v169 = vld [vmem:[%s4 + $0x28] sm:$0xff]
    %v170 = vld [vmem:[%s4 + $0x30] sm:$0xff]
    %v171 = vld [vmem:[%s4 + $0x38] sm:$0xff]
    %v172 = vld [vmem:[%s4 + $0x40] sm:$0xff]
    %v173 = vld [vmem:[%s4 + $0x48] sm:$0xff]
    %v174 = vld [vmem:[%s4 + $0x50] sm:$0xff]
    %v175 = vld [vmem:[%s4 + $0x58] sm:$0xff]
    %v176 = vld [vmem:[%s4 + $0x60] sm:$0xff]
    %v177 = vld [vmem:[%s4 + $0x68] sm:$0xff]
    %v178 = vld [vmem:[%s4 + $0x70] sm:$0xff]
    %v179 = vld [vmem:[%s4 + $0x78] sm:$0xff]
    %v180 = vld [vmem:[%s5] sm:$0x3]
    %v181 = vld [vmem:[%s1] sm:$0xff]
    %v183 = vperm.slane %v180, 0
    %v184 = vperm.slane %v180, 1
    %vm187 = vcmask 523264
    %v189 = vsel %vm187, %v181, 0
    %191 = vmatpush.msra.mxu0 0.0
    %192 = vmatpush.msra.mxu0 0.0
    %193 = vmatpush.msra.mxu0 0.0
    %194 = vmatpush.msra.mxu0 0.0
    %195 = vmatpush.msra.mxu0 0.0
    %196 = vmatpush.msra.mxu0 0.0
    %197 = vmatpush.msra.mxu0 0.0
    %198 = vmatpush.msra.mxu0 0.0
    %199 = vmatpush.msra.mxu0 %v178
    %200 = vmatpush.msra.mxu0 %v176
    %201 = vmatpush.msra.mxu0 %v174
    %202 = vmatpush.msra.mxu0 %v172
    %203 = vmatpush.msra.mxu0 %v170
    %204 = vmatpush.msra.mxu0 %v168
    %205 = vmatpush.msra.mxu0 %v166
    %206 = vmatpush.msra.mxu0 %v164
    %207 = vmatmul.f32.gmra.mxu0 %v189
    %v208 = vpop.f32.mrf.mxu0
    %v209 = vadd.f32 %v183, %v208
    %210 = vdwg.mxu0
    %211 = vmatpush.msra.mxu0 0.0
    %212 = vmatpush.msra.mxu0 0.0
    %213 = vmatpush.msra.mxu0 0.0
    %214 = vmatpush.msra.mxu0 0.0
    %215 = vmatpush.msra.mxu0 0.0
    %216 = vmatpush.msra.mxu0 0.0
    %217 = vmatpush.msra.mxu0 0.0
    %218 = vmatpush.msra.mxu0 0.0
    %219 = vmatpush.msra.mxu0 %v179
    %220 = vmatpush.msra.mxu0 %v177
    %221 = vmatpush.msra.mxu0 %v175
    %222 = vmatpush.msra.mxu0 %v173
    %223 = vmatpush.msra.mxu0 %v171
    %224 = vmatpush.msra.mxu0 %v169
    %225 = vmatpush.msra.mxu0 %v167
    %226 = vmatpush.msra.mxu0 %v165
    %227 = vmatmul.f32.gmra.mxu0 %v189
    %v228 = vpop.f32.mrf.mxu0
    %v229 = vadd.f32 %v184, %v228
    %230 = vdwg.mxu0
    %v231 = vadd.f32 %v100, %v209
    %v232 = vxor.u32 %v231, 2147483648
    %v233 = vmul.f32 %v232, 1.442695
    %v234 = vpow.pop %v233
    %v235 = vadd.f32 %v234, 1.0
    %v236 = vrcp.pop %v235
    %v237 = vmul.f32 %v235, %v236
    %v238 = vsub.f32 1.0, %v237
    %v239 = vmul.f32 %v236, %v238
    %v240 = vadd.f32 %v236, %v239
    %vm241 = vweird.f32 %v235
    %vm242 = vweird.f32 %v236
    %vm243 = vmor %vm241, %vm242
    %v244 = vsel %vm243, %v236, %v240
    %v245 = vand.u32 2147483647, %v235
    %vm246 = vcmp.eq.f32.partialorder %v245, 8.507059e+37
    %v247 = vand.u32 %v235, 2147483648
    %v248 = vor.u32 1.1754944e-38, %v247
    %v249 = vsel %vm246, %v248, %v244
    %v250 = vmul.f32 1.0, %v249
    %v251 = vmul.f32 %v250, %v229
    %v252 = vadd.f32 %v141, %v251
    %v253 = vtanh.pop %v252
    %v254 = vsub.f32 1.0, %v250
    %256 = vrot.lane.b32.xlu0 %v253, 64
    %v257 = vpop.permute.xlu0 %256
    %v259 = vmul.f32 %v254, %v257
    %260 = vrot.lane.b32.xlu0 %v181, 64
    %v261 = vpop.permute.xlu0 %260
    %v263 = vmul.f32 %v250, %v261
    %v264 = vadd.f32 %v259, %v263
    %266 = vrot.lane.b32.xlu0 %v264, 64
    %v267 = vpop.permute.xlu0 %266
    %v268 = vsel %vm187, %v267, 0
    %270 = vmatpush.msra.mxu0 0.0
    %271 = vmatpush.msra.mxu0 0.0
    %272 = vmatpush.msra.mxu0 0.0
    %273 = vmatpush.msra.mxu0 0.0
    %274 = vmatpush.msra.mxu0 0.0
    %275 = vmatpush.msra.mxu0 0.0
    %276 = vmatpush.msra.mxu0 0.0
    %277 = vmatpush.msra.mxu0 0.0
    %278 = vmatpush.msra.mxu0 %v178
    %279 = vmatpush.msra.mxu0 %v176
    %280 = vmatpush.msra.mxu0 %v174
    %281 = vmatpush.msra.mxu0 %v172
    %282 = vmatpush.msra.mxu0 %v170
    %283 = vmatpush.msra.mxu0 %v168
    %284 = vmatpush.msra.mxu0 %v166
    %285 = vmatpush.msra.mxu0 %v164
    %286 = vmatmul.f32.gmra.mxu0 %v268
    %v287 = vpop.f32.mrf.mxu0
    %v288 = vadd.f32 %v183, %v287
    %289 = vdwg.mxu0
    %290 = vmatpush.msra.mxu0 0.0
    %291 = vmatpush.msra.mxu0 0.0
    %292 = vmatpush.msra.mxu0 0.0
    %293 = vmatpush.msra.mxu0 0.0
    %294 = vmatpush.msra.mxu0 0.0
    %295 = vmatpush.msra.mxu0 0.0
    %296 = vmatpush.msra.mxu0 0.0
    %297 = vmatpush.msra.mxu0 0.0
    %298 = vmatpush.msra.mxu0 %v179
    %299 = vmatpush.msra.mxu0 %v177
    %300 = vmatpush.msra.mxu0 %v175
    %301 = vmatpush.msra.mxu0 %v173
    %302 = vmatpush.msra.mxu0 %v171
    %303 = vmatpush.msra.mxu0 %v169
    %304 = vmatpush.msra.mxu0 %v167
    %305 = vmatpush.msra.mxu0 %v165
    %306 = vmatmul.f32.gmra.mxu0 %v268
    %v307 = vpop.f32.mrf.mxu0
    %v308 = vadd.f32 %v184, %v307
    %309 = vdwg.mxu0
    %v310 = vadd.f32 %v103, %v288
    %v311 = vxor.u32 %v310, 2147483648
    %v312 = vmul.f32 %v311, 1.442695
    %v313 = vpow.pop %v312
    %v314 = vadd.f32 %v313, 1.0
    %v315 = vrcp.pop %v314
    %v316 = vmul.f32 %v314, %v315
    %v317 = vsub.f32 1.0, %v316
    %v318 = vmul.f32 %v315, %v317
    %v319 = vadd.f32 %v315, %v318
    %vm320 = vweird.f32 %v314
    %vm321 = vweird.f32 %v315
    %vm322 = vmor %vm320, %vm321
    %v323 = vsel %vm322, %v315, %v319
    %v324 = vand.u32 2147483647, %v314
    %vm325 = vcmp.eq.f32.partialorder %v324, 8.507059e+37
    %v326 = vand.u32 %v314, 2147483648
    %v327 = vor.u32 1.1754944e-38, %v326
    %v328 = vsel %vm325, %v327, %v323
    %v329 = vmul.f32 1.0, %v328
    %v330 = vmul.f32 %v329, %v308
    %v331 = vadd.f32 %v144, %v330
    %v332 = vtanh.pop %v331
    %v333 = vsub.f32 1.0, %v329
    %335 = vrot.lane.b32.xlu0 %v332, 64
    %v336 = vpop.permute.xlu0 %335
    %v338 = vmul.f32 %v333, %v336
    %v339 = vmul.f32 %v329, %v264
    %v340 = vadd.f32 %v338, %v339
    %342 = vrot.lane.b32.xlu0 %v340, 64
    %v343 = vpop.permute.xlu0 %342
    %v344 = vsel %vm187, %v343, 0
    %346 = vmatpush.msra.mxu0 0.0
    %347 = vmatpush.msra.mxu0 0.0
    %348 = vmatpush.msra.mxu0 0.0
    %349 = vmatpush.msra.mxu0 0.0
    %350 = vmatpush.msra.mxu0 0.0
    %351 = vmatpush.msra.mxu0 0.0
    %352 = vmatpush.msra.mxu0 0.0
    %353 = vmatpush.msra.mxu0 0.0
    %354 = vmatpush.msra.mxu0 %v178
    %355 = vmatpush.msra.mxu0 %v176
    %356 = vmatpush.msra.mxu0 %v174
    %357 = vmatpush.msra.mxu0 %v172
    %358 = vmatpush.msra.mxu0 %v170
    %359 = vmatpush.msra.mxu0 %v168
    %360 = vmatpush.msra.mxu0 %v166
    %361 = vmatpush.msra.mxu0 %v164
    %362 = vmatmul.f32.gmra.mxu0 %v344
    %v363 = vpop.f32.mrf.mxu0
    %v364 = vadd.f32 %v183, %v363
    %365 = vdwg.mxu0
    %366 = vmatpush.msra.mxu0 0.0
    %367 = vmatpush.msra.mxu0 0.0
    %368 = vmatpush.msra.mxu0 0.0
    %369 = vmatpush.msra.mxu0 0.0
    %370 = vmatpush.msra.mxu0 0.0
    %371 = vmatpush.msra.mxu0 0.0
    %372 = vmatpush.msra.mxu0 0.0
    %373 = vmatpush.msra.mxu0 0.0
    %374 = vmatpush.msra.mxu0 %v179
    %375 = vmatpush.msra.mxu0 %v177
    %376 = vmatpush.msra.mxu0 %v175
    %377 = vmatpush.msra.mxu0 %v173
    %378 = vmatpush.msra.mxu0 %v171
    %379 = vmatpush.msra.mxu0 %v169
    %380 = vmatpush.msra.mxu0 %v167
    %381 = vmatpush.msra.mxu0 %v165
    %382 = vmatmul.f32.gmra.mxu0 %v344
    %v383 = vpop.f32.mrf.mxu0
    %v384 = vadd.f32 %v184, %v383
    %385 = vdwg.mxu0
    %v386 = vadd.f32 %v106, %v364
    %v387 = vxor.u32 %v386, 2147483648
    %v388 = vmul.f32 %v387, 1.442695
    %v389 = vpow.pop %v388
    %v390 = vadd.f32 %v389, 1.0
    %v391 = vrcp.pop %v390
    %v392 = vmul.f32 %v390, %v391
    %v393 = vsub.f32 1.0, %v392
    %v394 = vmul.f32 %v391, %v393
    %v395 = vadd.f32 %v391, %v394
    %vm396 = vweird.f32 %v390
    %vm397 = vweird.f32 %v391
    %vm398 = vmor %vm396, %vm397
    %v399 = vsel %vm398, %v391, %v395
    %v400 = vand.u32 2147483647, %v390
    %vm401 = vcmp.eq.f32.partialorder %v400, 8.507059e+37
    %v402 = vand.u32 %v390, 2147483648
    %v403 = vor.u32 1.1754944e-38, %v402
    %v404 = vsel %vm401, %v403, %v399
    %v405 = vmul.f32 1.0, %v404
    %v406 = vmul.f32 %v405, %v384
    %v407 = vadd.f32 %v147, %v406
    %v408 = vtanh.pop %v407
    %v409 = vsub.f32 1.0, %v405
    %411 = vrot.lane.b32.xlu0 %v408, 64
    %v412 = vpop.permute.xlu0 %411
    %v414 = vmul.f32 %v409, %v412
    %v415 = vmul.f32 %v405, %v340
    %v416 = vadd.f32 %v414, %v415
    %418 = vrot.lane.b32.xlu0 %v416, 64
    %v419 = vpop.permute.xlu0 %418
    %v420 = vsel %vm187, %v419, 0
    %422 = vmatpush.msra.mxu0 0.0
    %423 = vmatpush.msra.mxu0 0.0
    %424 = vmatpush.msra.mxu0 0.0
    %425 = vmatpush.msra.mxu0 0.0
    %426 = vmatpush.msra.mxu0 0.0
    %427 = vmatpush.msra.mxu0 0.0
    %428 = vmatpush.msra.mxu0 0.0
    %429 = vmatpush.msra.mxu0 0.0
    %430 = vmatpush.msra.mxu0 %v178
    %431 = vmatpush.msra.mxu0 %v176
    %432 = vmatpush.msra.mxu0 %v174
    %433 = vmatpush.msra.mxu0 %v172
    %434 = vmatpush.msra.mxu0 %v170
    %435 = vmatpush.msra.mxu0 %v168
    %436 = vmatpush.msra.mxu0 %v166
    %437 = vmatpush.msra.mxu0 %v164
    %438 = vmatmul.f32.gmra.mxu0 %v420
    %v439 = vpop.f32.mrf.mxu0
    %v440 = vadd.f32 %v183, %v439
    %441 = vdwg.mxu0
    %442 = vmatpush.msra.mxu0 0.0
    %443 = vmatpush.msra.mxu0 0.0
    %444 = vmatpush.msra.mxu0 0.0
    %445 = vmatpush.msra.mxu0 0.0
    %446 = vmatpush.msra.mxu0 0.0
    %447 = vmatpush.msra.mxu0 0.0
    %448 = vmatpush.msra.mxu0 0.0
    %449 = vmatpush.msra.mxu0 0.0
    %450 = vmatpush.msra.mxu0 %v179
    %451 = vmatpush.msra.mxu0 %v177
    %452 = vmatpush.msra.mxu0 %v175
    %453 = vmatpush.msra.mxu0 %v173
    %454 = vmatpush.msra.mxu0 %v171
    %455 = vmatpush.msra.mxu0 %v169
    %456 = vmatpush.msra.mxu0 %v167
    %457 = vmatpush.msra.mxu0 %v165
    %458 = vmatmul.f32.gmra.mxu0 %v420
    %v459 = vpop.f32.mrf.mxu0
    %v460 = vadd.f32 %v184, %v459
    %461 = vdwg.mxu0
    %v462 = vadd.f32 %v109, %v440
    %v463 = vxor.u32 %v462, 2147483648
    %v464 = vmul.f32 %v463, 1.442695
    %v465 = vpow.pop %v464
    %v466 = vadd.f32 %v465, 1.0
    %v467 = vrcp.pop %v466
    %v468 = vmul.f32 %v466, %v467
    %v469 = vsub.f32 1.0, %v468
    %v470 = vmul.f32 %v467, %v469
    %v471 = vadd.f32 %v467, %v470
    %vm472 = vweird.f32 %v466
    %vm473 = vweird.f32 %v467
    %vm474 = vmor %vm472, %vm473
    %v475 = vsel %vm474, %v467, %v471
    %v476 = vand.u32 2147483647, %v466
    %vm477 = vcmp.eq.f32.partialorder %v476, 8.507059e+37
    %v478 = vand.u32 %v466, 2147483648
    %v479 = vor.u32 1.1754944e-38, %v478
    %v480 = vsel %vm477, %v479, %v475
    %v481 = vmul.f32 1.0, %v480
    %v482 = vmul.f32 %v481, %v460
    %v483 = vadd.f32 %v150, %v482
    %v484 = vtanh.pop %v483
    %v485 = vsub.f32 1.0, %v481
    %487 = vrot.lane.b32.xlu0 %v484, 64
    %v488 = vpop.permute.xlu0 %487
    %v490 = vmul.f32 %v485, %v488
    %v491 = vmul.f32 %v481, %v416
    %v492 = vadd.f32 %v490, %v491
    %494 = vrot.lane.b32.xlu0 %v492, 64
    %v495 = vpop.permute.xlu0 %494
    %v496 = vsel %vm187, %v495, 0
    %498 = vmatpush.msra.mxu0 0.0
    %499 = vmatpush.msra.mxu0 0.0
    %500 = vmatpush.msra.mxu0 0.0
    %501 = vmatpush.msra.mxu0 0.0
    %502 = vmatpush.msra.mxu0 0.0
    %503 = vmatpush.msra.mxu0 0.0
    %504 = vmatpush.msra.mxu0 0.0
    %505 = vmatpush.msra.mxu0 0.0
    %506 = vmatpush.msra.mxu0 %v178
    %507 = vmatpush.msra.mxu0 %v176
    %508 = vmatpush.msra.mxu0 %v174
    %509 = vmatpush.msra.mxu0 %v172
    %510 = vmatpush.msra.mxu0 %v170
    %511 = vmatpush.msra.mxu0 %v168
    %512 = vmatpush.msra.mxu0 %v166
    %513 = vmatpush.msra.mxu0 %v164
    %514 = vmatmul.f32.gmra.mxu0 %v496
    %v515 = vpop.f32.mrf.mxu0
    %v516 = vadd.f32 %v183, %v515
    %517 = vdwg.mxu0
    %518 = vmatpush.msra.mxu0 0.0
    %519 = vmatpush.msra.mxu0 0.0
    %520 = vmatpush.msra.mxu0 0.0
    %521 = vmatpush.msra.mxu0 0.0
    %522 = vmatpush.msra.mxu0 0.0
    %523 = vmatpush.msra.mxu0 0.0
    %524 = vmatpush.msra.mxu0 0.0
    %525 = vmatpush.msra.mxu0 0.0
    %526 = vmatpush.msra.mxu0 %v179
    %527 = vmatpush.msra.mxu0 %v177
    %528 = vmatpush.msra.mxu0 %v175
    %529 = vmatpush.msra.mxu0 %v173
    %530 = vmatpush.msra.mxu0 %v171
    %531 = vmatpush.msra.mxu0 %v169
    %532 = vmatpush.msra.mxu0 %v167
    %533 = vmatpush.msra.mxu0 %v165
    %534 = vmatmul.f32.gmra.mxu0 %v496
    %v535 = vpop.f32.mrf.mxu0
    %v536 = vadd.f32 %v184, %v535
    %537 = vdwg.mxu0
    %v538 = vadd.f32 %v112, %v516
    %v539 = vxor.u32 %v538, 2147483648
    %v540 = vmul.f32 %v539, 1.442695
    %v541 = vpow.pop %v540
    %v542 = vadd.f32 %v541, 1.0
    %v543 = vrcp.pop %v542
    %v544 = vmul.f32 %v542, %v543
    %v545 = vsub.f32 1.0, %v544
    %v546 = vmul.f32 %v543, %v545
    %v547 = vadd.f32 %v543, %v546
    %vm548 = vweird.f32 %v542
    %vm549 = vweird.f32 %v543
    %vm550 = vmor %vm548, %vm549
    %v551 = vsel %vm550, %v543, %v547
    %v552 = vand.u32 2147483647, %v542
    %vm553 = vcmp.eq.f32.partialorder %v552, 8.507059e+37
    %v554 = vand.u32 %v542, 2147483648
    %v555 = vor.u32 1.1754944e-38, %v554
    %v556 = vsel %vm553, %v555, %v551
    %v557 = vmul.f32 1.0, %v556
    %v558 = vmul.f32 %v557, %v536
    %v559 = vadd.f32 %v153, %v558
    %v560 = vtanh.pop %v559
    %v561 = vsub.f32 1.0, %v557
    %563 = vrot.lane.b32.xlu0 %v560, 64
    %v564 = vpop.permute.xlu0 %563
    %v566 = vmul.f32 %v561, %v564
    %v567 = vmul.f32 %v557, %v492
    %v568 = vadd.f32 %v566, %v567
    %570 = vrot.lane.b32.xlu0 %v568, 64
    %v571 = vpop.permute.xlu0 %570
    %v572 = vsel %vm187, %v571, 0
    %574 = vmatpush.msra.mxu0 0.0
    %575 = vmatpush.msra.mxu0 0.0
    %576 = vmatpush.msra.mxu0 0.0
    %577 = vmatpush.msra.mxu0 0.0
    %578 = vmatpush.msra.mxu0 0.0
    %579 = vmatpush.msra.mxu0 0.0
    %580 = vmatpush.msra.mxu0 0.0
    %581 = vmatpush.msra.mxu0 0.0
    %582 = vmatpush.msra.mxu0 %v178
    %583 = vmatpush.msra.mxu0 %v176
    %584 = vmatpush.msra.mxu0 %v174
    %585 = vmatpush.msra.mxu0 %v172
    %586 = vmatpush.msra.mxu0 %v170
    %587 = vmatpush.msra.mxu0 %v168
    %588 = vmatpush.msra.mxu0 %v166
    %589 = vmatpush.msra.mxu0 %v164
    %590 = vmatmul.f32.gmra.mxu0 %v572
    %v591 = vpop.f32.mrf.mxu0
    %v592 = vadd.f32 %v183, %v591
    %593 = vdwg.mxu0
    %594 = vmatpush.msra.mxu0 0.0
    %595 = vmatpush.msra.mxu0 0.0
    %596 = vmatpush.msra.mxu0 0.0
    %597 = vmatpush.msra.mxu0 0.0
    %598 = vmatpush.msra.mxu0 0.0
    %599 = vmatpush.msra.mxu0 0.0
    %600 = vmatpush.msra.mxu0 0.0
    %601 = vmatpush.msra.mxu0 0.0
    %602 = vmatpush.msra.mxu0 %v179
    %603 = vmatpush.msra.mxu0 %v177
    %604 = vmatpush.msra.mxu0 %v175
    %605 = vmatpush.msra.mxu0 %v173
    %606 = vmatpush.msra.mxu0 %v171
    %607 = vmatpush.msra.mxu0 %v169
    %608 = vmatpush.msra.mxu0 %v167
    %609 = vmatpush.msra.mxu0 %v165
    %610 = vmatmul.f32.gmra.mxu0 %v572
    %v611 = vpop.f32.mrf.mxu0
    %v612 = vadd.f32 %v184, %v611
    %613 = vdwg.mxu0
    %v614 = vadd.f32 %v115, %v592
    %v615 = vxor.u32 %v614, 2147483648
    %v616 = vmul.f32 %v615, 1.442695
    %v617 = vpow.pop %v616
    %v618 = vadd.f32 %v617, 1.0
    %v619 = vrcp.pop %v618
    %v620 = vmul.f32 %v618, %v619
    %v621 = vsub.f32 1.0, %v620
    %v622 = vmul.f32 %v619, %v621
    %v623 = vadd.f32 %v619, %v622
    %vm624 = vweird.f32 %v618
    %vm625 = vweird.f32 %v619
    %vm626 = vmor %vm624, %vm625
    %v627 = vsel %vm626, %v619, %v623
    %v628 = vand.u32 2147483647, %v618
    %vm629 = vcmp.eq.f32.partialorder %v628, 8.507059e+37
    %v630 = vand.u32 %v618, 2147483648
    %v631 = vor.u32 1.1754944e-38, %v630
    %v632 = vsel %vm629, %v631, %v627
    %v633 = vmul.f32 1.0, %v632
    %v634 = vmul.f32 %v633, %v612
    %v635 = vadd.f32 %v156, %v634
    %v636 = vtanh.pop %v635
    %v637 = vsub.f32 1.0, %v633
    %639 = vrot.lane.b32.xlu0 %v636, 64
    %v640 = vpop.permute.xlu0 %639
    %v642 = vmul.f32 %v637, %v640
    %v643 = vmul.f32 %v633, %v568
    %v644 = vadd.f32 %v642, %v643
    %646 = vrot.lane.b32.xlu0 %v644, 64
    %v647 = vpop.permute.xlu0 %646
    %v648 = vsel %vm187, %v647, 0
    %650 = vmatpush.msra.mxu0 0.0
    %651 = vmatpush.msra.mxu0 0.0
    %652 = vmatpush.msra.mxu0 0.0
    %653 = vmatpush.msra.mxu0 0.0
    %654 = vmatpush.msra.mxu0 0.0
    %655 = vmatpush.msra.mxu0 0.0
    %656 = vmatpush.msra.mxu0 0.0
    %657 = vmatpush.msra.mxu0 0.0
    %658 = vmatpush.msra.mxu0 %v178
    %659 = vmatpush.msra.mxu0 %v176
    %660 = vmatpush.msra.mxu0 %v174
    %661 = vmatpush.msra.mxu0 %v172
    %662 = vmatpush.msra.mxu0 %v170
    %663 = vmatpush.msra.mxu0 %v168
    %664 = vmatpush.msra.mxu0 %v166
    %665 = vmatpush.msra.mxu0 %v164
    %666 = vmatmul.f32.gmra.mxu0 %v648
    %v667 = vpop.f32.mrf.mxu0
    %v668 = vadd.f32 %v183, %v667
    %669 = vdwg.mxu0
    %670 = vmatpush.msra.mxu0 0.0
    %671 = vmatpush.msra.mxu0 0.0
    %672 = vmatpush.msra.mxu0 0.0
    %673 = vmatpush.msra.mxu0 0.0
    %674 = vmatpush.msra.mxu0 0.0
    %675 = vmatpush.msra.mxu0 0.0
    %676 = vmatpush.msra.mxu0 0.0
    %677 = vmatpush.msra.mxu0 0.0
    %678 = vmatpush.msra.mxu0 %v179
    %679 = vmatpush.msra.mxu0 %v177
    %680 = vmatpush.msra.mxu0 %v175
    %681 = vmatpush.msra.mxu0 %v173
    %682 = vmatpush.msra.mxu0 %v171
    %683 = vmatpush.msra.mxu0 %v169
    %684 = vmatpush.msra.mxu0 %v167
    %685 = vmatpush.msra.mxu0 %v165
    %686 = vmatmul.f32.gmra.mxu0 %v648
    %v687 = vpop.f32.mrf.mxu0
    %v688 = vadd.f32 %v184, %v687
    %689 = vdwg.mxu0
    %v690 = vadd.f32 %v118, %v668
    %v691 = vxor.u32 %v690, 2147483648
    %v692 = vmul.f32 %v691, 1.442695
    %v693 = vpow.pop %v692
    %v694 = vadd.f32 %v693, 1.0
    %v695 = vrcp.pop %v694
    %v696 = vmul.f32 %v694, %v695
    %v697 = vsub.f32 1.0, %v696
    %v698 = vmul.f32 %v695, %v697
    %v699 = vadd.f32 %v695, %v698
    %vm700 = vweird.f32 %v694
    %vm701 = vweird.f32 %v695
    %vm702 = vmor %vm700, %vm701
    %v703 = vsel %vm702, %v695, %v699
    %v704 = vand.u32 2147483647, %v694
    %vm705 = vcmp.eq.f32.partialorder %v704, 8.507059e+37
    %v706 = vand.u32 %v694, 2147483648
    %v707 = vor.u32 1.1754944e-38, %v706
    %v708 = vsel %vm705, %v707, %v703
    %v709 = vmul.f32 1.0, %v708
    %v710 = vmul.f32 %v709, %v688
    %v711 = vadd.f32 %v159, %v710
    %v712 = vtanh.pop %v711
    %v713 = vsub.f32 1.0, %v709
    %715 = vrot.lane.b32.xlu0 %v712, 64
    %v716 = vpop.permute.xlu0 %715
    %v718 = vmul.f32 %v713, %v716
    %v719 = vmul.f32 %v709, %v644
    %v720 = vadd.f32 %v718, %v719
    %722 = vrot.lane.b32.xlu0 %v720, 64
    %v723 = vpop.permute.xlu0 %722
    %v724 = vsel %vm187, %v723, 0
    %726 = vmatpush.msra.mxu0 0.0
    %727 = vmatpush.msra.mxu0 0.0
    %728 = vmatpush.msra.mxu0 0.0
    %729 = vmatpush.msra.mxu0 0.0
    %730 = vmatpush.msra.mxu0 0.0
    %731 = vmatpush.msra.mxu0 0.0
    %732 = vmatpush.msra.mxu0 0.0
    %733 = vmatpush.msra.mxu0 0.0
    %734 = vmatpush.msra.mxu0 %v178
    %735 = vmatpush.msra.mxu0 %v176
    %736 = vmatpush.msra.mxu0 %v174
    %737 = vmatpush.msra.mxu0 %v172
    %738 = vmatpush.msra.mxu0 %v170
    %739 = vmatpush.msra.mxu0 %v168
    %740 = vmatpush.msra.mxu0 %v166
    %741 = vmatpush.msra.mxu0 %v164
    %742 = vmatmul.f32.gmra.mxu0 %v724
    %v743 = vpop.f32.mrf.mxu0
    %v744 = vadd.f32 %v183, %v743
    %745 = vdwg.mxu0
    %746 = vmatpush.msra.mxu0 0.0
    %747 = vmatpush.msra.mxu0 0.0
    %748 = vmatpush.msra.mxu0 0.0
    %749 = vmatpush.msra.mxu0 0.0
    %750 = vmatpush.msra.mxu0 0.0
    %751 = vmatpush.msra.mxu0 0.0
    %752 = vmatpush.msra.mxu0 0.0
    %753 = vmatpush.msra.mxu0 0.0
    %754 = vmatpush.msra.mxu0 %v179
    %755 = vmatpush.msra.mxu0 %v177
    %756 = vmatpush.msra.mxu0 %v175
    %757 = vmatpush.msra.mxu0 %v173
    %758 = vmatpush.msra.mxu0 %v171
    %759 = vmatpush.msra.mxu0 %v169
    %760 = vmatpush.msra.mxu0 %v167
    %761 = vmatpush.msra.mxu0 %v165
    %762 = vmatmul.f32.gmra.mxu0 %v724
    %v763 = vpop.f32.mrf.mxu0
    %v764 = vadd.f32 %v184, %v763
    %765 = vdwg.mxu0
    %v766 = vadd.f32 %v121, %v744
    %v767 = vxor.u32 %v766, 2147483648
    %v768 = vmul.f32 %v767, 1.442695
    %v769 = vpow.pop %v768
    %v770 = vadd.f32 %v769, 1.0
    %v771 = vrcp.pop %v770
    %v772 = vmul.f32 %v770, %v771
    %v773 = vsub.f32 1.0, %v772
    %v774 = vmul.f32 %v771, %v773
    %v775 = vadd.f32 %v771, %v774
    %vm776 = vweird.f32 %v770
    %vm777 = vweird.f32 %v771
    %vm778 = vmor %vm776, %vm777
    %v779 = vsel %vm778, %v771, %v775
    %v780 = vand.u32 2147483647, %v770
    %vm781 = vcmp.eq.f32.partialorder %v780, 8.507059e+37
    %v782 = vand.u32 %v770, 2147483648
    %v783 = vor.u32 1.1754944e-38, %v782
    %v784 = vsel %vm781, %v783, %v779
    %v785 = vmul.f32 1.0, %v784
    %v786 = vmul.f32 %v785, %v764
    %v787 = vadd.f32 %v162, %v786
    %v788 = vtanh.pop %v787
    %v789 = vsub.f32 1.0, %v785
    %791 = vrot.lane.b32.xlu0 %v788, 64
    %v792 = vpop.permute.xlu0 %791
    %v794 = vmul.f32 %v789, %v792
    %v795 = vmul.f32 %v785, %v720
    %v796 = vadd.f32 %v794, %v795
    %v797 = vlaneseq
    %v798 = vand.u32 %v797, 127
    %vm799 = vcmp.lt.s32.totalorder %v798, 32
    %802 = vrot.lane.b32.xlu0 %v796, 64
    %v803 = vpop.permute.xlu0 %802
    %v805 = vsel %vm799, %v267, %v803
    %v808 = vsel %vm799, %v343, %v723
    %v811 = vsel %vm799, %v419, %v647
    %v814 = vsel %vm799, %v495, %v571
    %v815 = vsel %vm799, %v571, %v495
    %v816 = vsel %vm799, %v647, %v419
    %v817 = vsel %vm799, %v723, %v343
    %v818 = vsel %vm799, %v803, %v267
    %820 = vrot.lane.b32.xlu0 %v808, 64
    %v821 = vpop.permute.xlu0 %820
    %824 = vrot.lane.b32.xlu0 %v814, 64
    %v825 = vpop.permute.xlu0 %824
    %828 = vrot.lane.b32.xlu0 %v816, 64
    %v829 = vpop.permute.xlu0 %828
    %832 = vrot.lane.b32.xlu0 %v818, 64
    %v833 = vpop.permute.xlu0 %832
    %v835 = vsel %vm187, %v805, %v821
    %v836 = vsel %vm187, %v811, %v825
    %v837 = vsel %vm187, %v815, %v829
    %v838 = vsel %vm187, %v817, %v833
    %839 = vst [vmem:[#allocation4] sm:$0xff] %v835
    %840 = vst [vmem:[#allocation4 + $0x8] sm:$0xff] %v836
    %841 = vst [vmem:[#allocation4 + $0x10] sm:$0xff] %v837
    %842 = vst [vmem:[#allocation4 + $0x18] sm:$0xff] %v838
    %v843 = vld [vmem:[%s6] sm:$0xff]
    %v844 = vld [vmem:[%s6 + $0x8] sm:$0xff]
    %v845 = vld [vmem:[%s6 + $0x10] sm:$0xff]
    %v846 = vld [vmem:[%s6 + $0x18] sm:$0xff]
    %v847 = vld [vmem:[%s6 + $0x20] sm:$0xff]
    %v848 = vld [vmem:[%s6 + $0x28] sm:$0xff]
    %v849 = vld [vmem:[%s6 + $0x30] sm:$0xff]
    %v850 = vld [vmem:[%s6 + $0x38] sm:$0xff]
    %v851 = vld [vmem:[%s7] sm:$0x1]
    %v853 = vperm.slane %v851, 0
    %v856 = vsel %vm187, %v805, 0
    %v858 = vsel %vm187, %v808, 0
    %v861 = vsel %vm187, %v811, 0
    %v863 = vsel %vm187, %v814, 0
    %v866 = vsel %vm187, %v815, 0
    %v868 = vsel %vm187, %v816, 0
    %v871 = vsel %vm187, %v817, 0
    %v873 = vsel %vm187, %v818, 0
    %875 = vmatpush.msra.mxu0 0.0
    %876 = vmatpush.msra.mxu0 0.0
    %877 = vmatpush.msra.mxu0 0.0
    %878 = vmatpush.msra.mxu0 0.0
    %879 = vmatpush.msra.mxu0 0.0
    %880 = vmatpush.msra.mxu0 0.0
    %881 = vmatpush.msra.mxu0 0.0
    %882 = vmatpush.msra.mxu0 0.0
    %883 = vmatpush.msra.mxu0 %v850
    %884 = vmatpush.msra.mxu0 %v849
    %885 = vmatpush.msra.mxu0 %v848
    %886 = vmatpush.msra.mxu0 %v847
    %887 = vmatpush.msra.mxu0 %v846
    %888 = vmatpush.msra.mxu0 %v845
    %889 = vmatpush.msra.mxu0 %v844
    %890 = vmatpush.msra.mxu0 %v843
    %891 = vmatmul.f32.gmra.mxu0 %v856
    %v892 = vpop.f32.mrf.mxu0
    %v893 = vadd.f32 %v853, %v892
    %894 = vmatmul.f32.gmra.mxu0 %v858
    %v895 = vpop.f32.mrf.mxu0
    %v896 = vadd.f32 %v853, %v895
    %897 = vmatmul.f32.gmra.mxu0 %v861
    %v898 = vpop.f32.mrf.mxu0
    %v899 = vadd.f32 %v853, %v898
    %900 = vmatmul.f32.gmra.mxu0 %v863
    %v901 = vpop.f32.mrf.mxu0
    %v902 = vadd.f32 %v853, %v901
    %903 = vmatmul.f32.gmra.mxu0 %v866
    %v904 = vpop.f32.mrf.mxu0
    %v905 = vadd.f32 %v853, %v904
    %906 = vmatmul.f32.gmra.mxu0 %v868
    %v907 = vpop.f32.mrf.mxu0
    %v908 = vadd.f32 %v853, %v907
    %909 = vmatmul.f32.gmra.mxu0 %v871
    %v910 = vpop.f32.mrf.mxu0
    %v911 = vadd.f32 %v853, %v910
    %912 = vmatmul.f32.gmra.mxu0 %v873
    %v913 = vpop.f32.mrf.mxu0
    %v914 = vadd.f32 %v853, %v913
    %915 = vdwg.mxu0
    %v916 = vtanh.pop %v893
    %v917 = vtanh.pop %v896
    %v918 = vtanh.pop %v899
    %v919 = vtanh.pop %v902
    %v920 = vtanh.pop %v905
    %v921 = vtanh.pop %v908
    %v922 = vtanh.pop %v911
    %v923 = vtanh.pop %v914
    %v924 = vld [vmem:[%s8] sm:$0x1]
    %v926 = vperm.slane %v924, 0
    %v928 = vmul.f32 %v916, %v926
    %v929 = vmul.f32 %v917, %v926
    %v930 = vmul.f32 %v918, %v926
    %v931 = vmul.f32 %v919, %v926
    %v932 = vmul.f32 %v920, %v926
    %v933 = vmul.f32 %v921, %v926
    %v934 = vmul.f32 %v922, %v926
    %v935 = vmul.f32 %v923, %v926
    %v936 = vsel %vm187, %v928, 0.0
    %937 = vadd.xlane.f32.xlu0 %v936
    %v938 = vpop.xlane.xlu0 %937
    %v939 = vsel %vm187, %v929, 0.0
    %940 = vadd.xlane.f32.xlu0 %v939
    %v941 = vpop.xlane.xlu0 %940
    %v942 = vsel %vm187, %v930, 0.0
    %943 = vadd.xlane.f32.xlu0 %v942
    %v944 = vpop.xlane.xlu0 %943
    %v945 = vsel %vm187, %v931, 0.0
    %946 = vadd.xlane.f32.xlu0 %v945
    %v947 = vpop.xlane.xlu0 %946
    %v948 = vsel %vm187, %v932, 0.0
    %949 = vadd.xlane.f32.xlu0 %v948
    %v950 = vpop.xlane.xlu0 %949
    %v951 = vsel %vm187, %v933, 0.0
    %952 = vadd.xlane.f32.xlu0 %v951
    %v953 = vpop.xlane.xlu0 %952
    %v954 = vsel %vm187, %v934, 0.0
    %955 = vadd.xlane.f32.xlu0 %v954
    %v956 = vpop.xlane.xlu0 %955
    %v957 = vsel %vm187, %v935, 0.0
    %958 = vadd.xlane.f32.xlu0 %v957
    %v959 = vpop.xlane.xlu0 %958
    %v960 = vtanh.pop %v938
    %v961 = vtanh.pop %v941
    %v962 = vtanh.pop %v944
    %v963 = vtanh.pop %v947
    %v964 = vtanh.pop %v950
    %v965 = vtanh.pop %v953
    %v966 = vtanh.pop %v956
    %v967 = vtanh.pop %v959
    %v968 = vmax.f32 %v960, %v964
    %v969 = vmax.f32 %v961, %v965
    %v970 = vmax.f32 %v962, %v966
    %v971 = vmax.f32 %v963, %v967
    %v972 = vmax.f32 %v968, %v969
    %v973 = vmax.f32 %v970, %v971
    %v974 = vmax.f32 %v972, %v973
    %v975 = vsub.f32 %v960, %v974
    %v976 = vsub.f32 %v961, %v974
    %v977 = vsub.f32 %v962, %v974
    %v978 = vsub.f32 %v963, %v974
    %v979 = vsub.f32 %v964, %v974
    %v980 = vsub.f32 %v965, %v974
    %v981 = vsub.f32 %v966, %v974
    %v982 = vsub.f32 %v967, %v974
    %v983 = vmul.f32 %v975, 1.442695
    %v984 = vpow.pop %v983
    %v985 = vmul.f32 %v976, 1.442695
    %v986 = vpow.pop %v985
    %v987 = vmul.f32 %v977, 1.442695
    %v988 = vpow.pop %v987
    %v989 = vmul.f32 %v978, 1.442695
    %v990 = vpow.pop %v989
    %v991 = vmul.f32 %v979, 1.442695
    %v992 = vpow.pop %v991
    %v993 = vmul.f32 %v980, 1.442695
    %v994 = vpow.pop %v993
    %v995 = vmul.f32 %v981, 1.442695
    %v996 = vpow.pop %v995
    %v997 = vmul.f32 %v982, 1.442695
    %v998 = vpow.pop %v997
    %v999 = vadd.f32 %v984, %v986
    %v1000 = vadd.f32 %v999, %v988
    %v1001 = vadd.f32 %v1000, %v990
    %v1002 = vadd.f32 %v1001, %v992
    %v1003 = vadd.f32 %v1002, %v994
    %v1004 = vadd.f32 %v1003, %v996
    %v1005 = vadd.f32 %v1004, %v998
    %v1006 = vrcp.pop %v1005
    %v1007 = vmul.f32 %v1005, %v1006
    %v1008 = vsub.f32 1.0, %v1007
    %v1009 = vmul.f32 %v1006, %v1008
    %v1010 = vadd.f32 %v1006, %v1009
    %vm1011 = vweird.f32 %v1005
    %vm1012 = vweird.f32 %v1006
    %vm1013 = vmor %vm1011, %vm1012
    %v1014 = vsel %vm1013, %v1006, %v1010
    %v1015 = vand.u32 2147483647, %v1005
    %vm1016 = vcmp.eq.f32.partialorder %v1015, 8.507059e+37
    %v1017 = vand.u32 %v1005, 2147483648
    %v1018 = vor.u32 1.1754944e-38, %v1017
    %v1019 = vsel %vm1016, %v1018, %v1014
    %v1020 = vmul.f32 %v984, %v1019
    %v1021 = vmul.f32 %v986, %v1019
    %v1022 = vmul.f32 %v988, %v1019
    %v1023 = vmul.f32 %v990, %v1019
    %v1024 = vmul.f32 %v992, %v1019
    %v1025 = vmul.f32 %v994, %v1019
    %v1026 = vmul.f32 %v996, %v1019
    %v1027 = vmul.f32 %v998, %v1019
    %v1028 = vmul.f32 %v805, %v1020
    %v1029 = vmul.f32 %v808, %v1021
    %v1030 = vmul.f32 %v811, %v1022
    %v1031 = vmul.f32 %v814, %v1023
    %v1032 = vmul.f32 %v815, %v1024
    %v1033 = vmul.f32 %v816, %v1025
    %v1034 = vmul.f32 %v817, %v1026
    %v1035 = vmul.f32 %v818, %v1027
    %v1036 = vsel %vm187, %v1028, 0.0
    %v1037 = vsel %vm187, %v1029, 0.0
    %v1038 = vadd.f32 %v1036, %v1037
    %v1039 = vsel %vm187, %v1030, 0.0
    %v1040 = vadd.f32 %v1038, %v1039
    %v1041 = vsel %vm187, %v1031, 0.0
    %v1042 = vadd.f32 %v1040, %v1041
    %v1043 = vsel %vm187, %v1032, 0.0
    %v1044 = vadd.f32 %v1042, %v1043
    %v1045 = vsel %vm187, %v1033, 0.0
    %v1046 = vadd.f32 %v1044, %v1045
    %v1047 = vsel %vm187, %v1034, 0.0
    %v1048 = vadd.f32 %v1046, %v1047
    %v1049 = vsel %vm187, %v1035, 0.0
    %v1050 = vadd.f32 %v1048, %v1049
    %1051 = vst.msk [vmem:[#allocation2] sm:$0xff] %vm187, %v1050
    // Predicated region
    $region38: #{tpu_custom_call.1} parent=1 // pred_check
      _
    $region39: #{tpu_custom_call.1} parent=1 // pred_check_branch
      %1053 = sbr.rel (0) target = $region41
    $region40: #{tpu_custom_call.1} parent=1 // pred_region
      %1055 = vsyncadd [#allocation3], 0
      %s1057 = sshll.u32 [#allocation2], 4
      %s1058 = int_to_ptr.vmem [resolvable:$true] %s1057
      %s1059 = sshll.u32 %s9, 4
      %s1060 = int_to_ptr.hbm [resolvable:$true] %s1059
      %1062 = dma.vmem_to_hbm [thread:$0]  %s1058, 128, %s1060, [#allocation3]
    $region41: #{tpu_custom_call.1} parent=1 // pred_fallthru
      _
    // Predicated region
    $region42: #{tpu_custom_call.1} parent=1 // pred_check
      _
    $region43: #{tpu_custom_call.1} parent=1 // pred_check_branch
      %1064 = sbr.rel (0) target = $region45
    $region44: #{tpu_custom_call.1} parent=1 // pred_region
      %1066 = vsyncadd [#allocation5], 0
      %s1068 = sshll.u32 [#allocation4], 4
      %s1069 = int_to_ptr.vmem [resolvable:$true] %s1068
      %s1070 = sshll.u32 %s10, 4
      %s1071 = int_to_ptr.hbm [resolvable:$true] %s1070
      %1073 = dma.vmem_to_hbm [thread:$0]  %s1069, 512, %s1071, [#allocation5]
    $region45: #{tpu_custom_call.1} parent=1 // pred_fallthru
      _
    // Predicated region
    $region46: #{tpu_custom_call.1} parent=1 // pred_check
      _
    $region47: #{tpu_custom_call.1} parent=1 // pred_check_branch
      %1075 = sbr.rel (0) target = $region49
    $region48: #{tpu_custom_call.1} parent=1 // pred_region
      %1077 = dma.done [#allocation3], 128
    $region49: #{tpu_custom_call.1} parent=1 // pred_fallthru
      _
    // Predicated region
    $region50: #{tpu_custom_call.1} parent=1 // pred_check
      _
    $region51: #{tpu_custom_call.1} parent=1 // pred_check_branch
      %1079 = sbr.rel (0) target = $region53
    $region52: #{tpu_custom_call.1} parent=1 // pred_region
      %1081 = dma.done [#allocation5], 512
    $region53: #{tpu_custom_call.1} parent=1 // pred_fallthru
      _
    %1082 = vsyncpa [#allocation3], 1
    %1083 = vsyncpa [#allocation5], 1

</llo_original>
